<compile_context>
chip_gen: v5e
topology: v5e:2x2
jax: 0.10.0
libtpu: 0.0.40
codegen_flags: <defaults>
</compile_context>

<pallas_src>
import functools

import jax
import jax.numpy as jnp
from jax import lax
from jax.experimental import pallas as pl
from jax.experimental.pallas import tpu as pltpu

EPS = 1e-5
_LANE = 128
_VMEM_LIMIT = 48 * 1024 * 1024        # > 32 MiB scoped default, < v7x 64 MiB physical
_PATCH_BUF_BUDGET = 12 * 1024 * 1024  # per pipelined patch buffer (x2 double buffering)


def _round_up(x, m):
    return ((x + m - 1) // m) * m


def _channel_pad(c):
    """Pad channel count to a power of two >= 8 (<=128) or a multiple of 128."""
    if c >= _LANE:
        return _round_up(c, _LANE)
    p = 8
    while p < c:
        p *= 2
    return p


# ---------------------------------------------------------------------------
# Pass 1: single-shot GEMM per M tile (conv via im2col) + per-tile BN partials
# ---------------------------------------------------------------------------
def _gemm_stats_kernel(patch_ref, w_ref, y_ref, s1_ref, s2_ref):
    # Full-K GEMM: no K grid axis, no scratch accumulator; weight block is
    # constant across the grid so it is DMA'd into VMEM exactly once.
    g = jnp.dot(patch_ref[...], w_ref[...], preferred_element_type=jnp.float32)
    y_ref[...] = g.astype(y_ref.dtype)                      # bf16 intermediate
    # BN partial sums on the pre-bias GEMM output: zero-padded M rows / K cols
    # contribute exactly 0, so no masking (and no program_id) is required.
    s1 = jnp.sum(g, axis=0, keepdims=True)
    s2 = jnp.sum(g * g, axis=0, keepdims=True)
    s1_ref[...] = jnp.broadcast_to(s1, s1_ref.shape)
    s2_ref[...] = jnp.broadcast_to(s2, s2_ref.shape)


# ---------------------------------------------------------------------------
# Pass 2: lane-dense fused BatchNorm apply (y*scale + shift) + ReLU
# ---------------------------------------------------------------------------
def _bn_relu_kernel(y_ref, scale_ref, shift_ref, o_ref):
    y = y_ref[...].astype(jnp.float32)
    o_ref[...] = jnp.maximum(y * scale_ref[...] + shift_ref[...], 0.0)


@functools.partial(jax.jit, static_argnames=("stride", "padding"))
def conv3d_bn_relu(x, weight, bias, gamma, beta, *, stride, padding):
    """Fused Conv3d + BatchNorm3d (training-mode stats) + ReLU.

    x: (N, Cin, D, H, W);  weight: (Cout, Cin, kd, kh, kw).
    The conv bias shifts both y and the batch mean, so it cancels exactly under
    training-mode BatchNorm and never enters the kernels.
    """
    del bias  # exactly cancelled by the batch-mean subtraction
    N, Cin, D, H, W = x.shape
    Cout, _, kd, kh, kw = weight.shape
    s, p = stride, padding
    Do = (D + 2 * p - kd) // s + 1
    Ho = (H + 2 * p - kh) // s + 1
    Wo = (W + 2 * p - kw) // s + 1
    M = N * Do * Ho * Wo
    K = Cin * kd * kh * kw

    # --- glue: pad + im2col (K ordering == weight.reshape(Cout, K) ordering) ---
    # TODO(synk): replace with in-kernel tap accumulation to kill the kd*kh*kw
    #             HBM expansion (dominant bandwidth term for 3x3x3 kernels).
    x_pad = jnp.pad(x, ((0, 0), (0, 0), (p, p), (p, p), (p, p)))
    taps = []
    for a in range(kd):
        for b in range(kh):
            for c in range(kw):
                taps.append(x_pad[:, :,
                                  a:a + (Do - 1) * s + 1:s,
                                  b:b + (Ho - 1) * s + 1:s,
                                  c:c + (Wo - 1) * s + 1:s])   # (N, Cin, Do, Ho, Wo)
    pat = jnp.stack(taps, axis=2)                      # (N, Cin, T, Do, Ho, Wo)
    pat = jnp.transpose(pat, (0, 3, 4, 5, 1, 2))       # (N, Do, Ho, Wo, Cin, T)
    patches = pat.reshape(M, K)

    # --- tiling (VMEM-aware, collapsed K) ---
    C8 = _channel_pad(Cout)
    K_pad = _round_up(K, _LANE)
    tm_cap = max(256, min(2048, (_PATCH_BUF_BUDGET // (K_pad * 2)) // 16 * 16))
    if M <= 512:
        TM = _round_up(M, 16)
    elif M <= 2 * tm_cap:
        TM = _round_up((M + 1) // 2, 16)    # >=2 tiles so both v7x TCs get work
    else:
        TM = tm_cap
    M_pad = _round_up(M, TM)
    n_m = M_pad // TM

    patches_p = jnp.pad(patches.astype(jnp.bfloat16),
                        ((0, M_pad - M), (0, K_pad - K)))
    w_p = jnp.pad(weight.reshape(Cout, K).T.astype(jnp.bfloat16),
                  ((0, K_pad - K), (0, C8 - Cout)))

    cost = pl.CostEstimate(
        flops=2 * M_pad * K_pad * C8, transcendentals=0,
        bytes_accessed=(M_pad * K_pad * 2 + K_pad * C8 * 2
                        + M_pad * C8 * 2 + 2 * n_m * 8 * C8 * 4))

    y, s1, s2 = pl.pallas_call(
        _gemm_stats_kernel,
        out_shape=(
            jax.ShapeDtypeStruct((M_pad, C8), jnp.bfloat16),    # conv output (pre-bias)
            jax.ShapeDtypeStruct((n_m * 8, C8), jnp.float32),   # per-tile sum
            jax.ShapeDtypeStruct((n_m * 8, C8), jnp.float32),   # per-tile sum of squares
        ),
        grid=(n_m,),
        in_specs=[
            pl.BlockSpec((TM, K_pad), lambda i: (i, 0)),        # patch tile (pipelined)
            pl.BlockSpec((K_pad, C8), lambda i: (0, 0)),        # weight, VMEM-resident
        ],
        out_specs=(
            pl.BlockSpec((TM, C8), lambda i: (i, 0)),
            pl.BlockSpec((8, C8), lambda i: (i, 0)),
            pl.BlockSpec((8, C8), lambda i: (i, 0)),
        ),
        compiler_params=pltpu.CompilerParams(
            dimension_semantics=("parallel",),
            vmem_limit_bytes=_VMEM_LIMIT),
        cost_estimate=cost,
    )(patches_p, w_p)

    # --- finalize BN statistics (tiny: O(n_m * C8)) ---
    s1_tot = jnp.sum(s1[::8], axis=0)                     # (C8,)
    s2_tot = jnp.sum(s2[::8], axis=0)                     # (C8,)
    mean = s1_tot / M
    var = jnp.maximum(s2_tot / M - mean * mean, 0.0)      # biased batch variance
    # TODO(synk): for very large M switch to mean-shifted / Welford-style tile
    #             partials to avoid E[x^2]-E[x]^2 cancellation.
    gamma_p = jnp.pad(gamma.astype(jnp.float32), (0, C8 - Cout))
    beta_p = jnp.pad(beta.astype(jnp.float32), (0, C8 - Cout))
    scale = gamma_p * lax.rsqrt(var + EPS)
    shift = beta_p - mean * scale

    # --- pass 2: lane-dense BN apply + ReLU ---
    # View (M_pad, C8) as (M_pad/pack, C8*pack) so every load/store is a full
    # 128-lane vector even for small Cout; tile scale/shift to match the view.
    pack = (_LANE // C8) if C8 < _LANE else 1
    view_w = C8 * pack
    rows = M_pad // pack
    r_blk = TM // pack
    y_view = y.reshape(rows, view_w)                      # pure metadata reshape
    scale_v = jnp.tile(scale, pack).reshape(1, view_w)
    shift_v = jnp.tile(shift, pack).reshape(1, view_w)

    out_view = pl.pallas_call(
        _bn_relu_kernel,
        out_shape=jax.ShapeDtypeStruct((rows, view_w), jnp.float32),
        grid=(n_m,),
        in_specs=[
            pl.BlockSpec((r_blk, view_w), lambda i: (i, 0)),
            pl.BlockSpec((1, view_w), lambda i: (0, 0)),
            pl.BlockSpec((1, view_w), lambda i: (0, 0)),
        ],
        out_specs=pl.BlockSpec((r_blk, view_w), lambda i: (i, 0)),
        compiler_params=pltpu.CompilerParams(
            dimension_semantics=("parallel",),
            vmem_limit_bytes=_VMEM_LIMIT),
    )(y_view, scale_v, shift_v)

    out = out_view.reshape(M_pad, C8)[:M, :Cout].reshape(N, Do, Ho, Wo, Cout)
    return jnp.transpose(out, (0, 4, 1, 2, 3))            # back to NCDHW


def reference(x, weight, bias, gamma, beta, stride, padding,
              compute_dtype=jnp.float32):
    """Pure-JAX reference: conv (+bias) + training-mode BN + ReLU."""
    y = lax.conv_general_dilated(
        x.astype(compute_dtype), weight.astype(compute_dtype),
        window_strides=(stride,) * 3,
        padding=[(padding, padding)] * 3,
        dimension_numbers=("NCDHW", "OIDHW", "NCDHW"),
        preferred_element_type=jnp.float32,
    ) + bias.reshape(1, -1, 1, 1, 1)
    m = jnp.mean(y, axis=(0, 2, 3, 4), keepdims=True)
    v = jnp.var(y, axis=(0, 2, 3, 4), keepdims=True)      # biased, like torch training BN
    yn = (y - m) * lax.rsqrt(v + EPS) * gamma.reshape(1, -1, 1, 1, 1) \
        + beta.reshape(1, -1, 1, 1, 1)
    return jnp.maximum(yn, 0.0)


if __name__ == "__main__":
    # small shapes consistent with the module
    N, Cin, Cout = 2, 4, 8
    D = H = W = 8
    k, s, p = 3, 1, 1

    key = jax.random.PRNGKey(0)
    kx, kw_, kb, kg, kbt = jax.random.split(key, 5)

    x = jax.random.normal(kx, (N, Cin, D, H, W), dtype=jnp.float32)
    fan_in = Cin * k * k * k
    weight = jax.random.normal(kw_, (Cout, Cin, k, k, k), dtype=jnp.float32) / jnp.sqrt(fan_in)
    bias = jax.random.normal(kb, (Cout,), dtype=jnp.float32) * 0.1
    gamma = 1.0 + 0.1 * jax.random.normal(kg, (Cout,), dtype=jnp.float32)
    beta = 0.1 * jax.random.normal(kbt, (Cout,), dtype=jnp.float32)

    out = conv3d_bn_relu(x, weight, bias, gamma, beta, stride=s, padding=p)
    out = jax.block_until_ready(out)
    assert out.shape == (N, Cout, D, H, W)

    # Check vs a reference that also rounds the matmul inputs to bf16 (like the kernel).
    ref_bf = reference(x, weight, bias, gamma, beta, s, p, jnp.bfloat16)
    err_bf = float(jnp.max(jnp.abs(out - ref_bf)))
    assert bool(jnp.allclose(out, ref_bf, atol=3e-2, rtol=3e-2)), err_bf

    # Looser check vs the full-f32 reference (diff = bf16 rounding of inputs and of y).
    ref_f32 = reference(x, weight, bias, gamma, beta, s, p, jnp.float32)
    err_f32 = float(jnp.max(jnp.abs(out - ref_f32)))
    assert bool(jnp.allclose(out, ref_f32, atol=7e-2, rtol=7e-2)), err_f32

    print("KERNEL_OK")
</pallas_src>

<mosaic_0001>
module attributes {stable_mosaic.version = 11 : i64} {
  func.func @_gemm_stats_kernel(%arg0: i32, %arg1: memref<512x128xbf16, #tpu.memory_space<vmem>>, %arg2: memref<128x8xbf16, #tpu.memory_space<vmem>>, %arg3: memref<512x8xbf16, #tpu.memory_space<vmem>>, %arg4: memref<8x8xf32, #tpu.memory_space<vmem>>, %arg5: memref<8x8xf32, #tpu.memory_space<vmem>>) attributes {dimension_semantics = [#tpu.dimension_semantics<parallel>], iteration_bounds = array<i64: 2>, scalar_prefetch = 0 : i64, scratch_operands = 0 : i64, tpu.core_type = #tpu.core_type<tc>, window_params = [{transform_indices = @transform_0, window_bounds = array<i64: 512, 128>}, {pipeline_mode = #tpu.pipeline_mode<synchronous>, transform_indices = @transform_1, window_bounds = array<i64: 128, 8>}, {transform_indices = @transform_2, window_bounds = array<i64: 512, 8>}, {transform_indices = @transform_3, window_bounds = array<i64: 8, 8>}, {transform_indices = @transform_4, window_bounds = array<i64: 8, 8>}]} {
    %c0 = arith.constant 0 : index
    %c0_0 = arith.constant 0 : index
    %0 = vector.load %arg1[%c0, %c0_0] : memref<512x128xbf16, #tpu.memory_space<vmem>>, vector<512x128xbf16>
    %c0_1 = arith.constant 0 : index
    %c0_2 = arith.constant 0 : index
    %1 = vector.load %arg2[%c0_1, %c0_2] : memref<128x8xbf16, #tpu.memory_space<vmem>>, vector<128x8xbf16>
    %cst = arith.constant dense<0.000000e+00> : vector<512x8xf32>
    %2 = tpu.matmul %0, %1, %cst {dimension_numbers = #tpu.dot_dimension_numbers<[1], [0], [0], [1], [0, 0, 1, 1], [], []>} : vector<512x128xbf16>, vector<128x8xbf16>, vector<512x8xf32> -> vector<512x8xf32>
    %3 = arith.truncf %2 : vector<512x8xf32> to vector<512x8xbf16>
    %c0_3 = arith.constant 0 : index
    %c0_4 = arith.constant 0 : index
    %4 = vector.load %arg3[%c0_3, %c0_4] : memref<512x8xbf16, #tpu.memory_space<vmem>>, vector<512x8xbf16>
    tpu.vector_store %arg3[%c0_3, %c0_4], %3 {strides = array<i32>} : memref<512x8xbf16, #tpu.memory_space<vmem>>, vector<512x8xbf16>,
    %cst_5 = arith.constant dense<0.000000e+00> : vector<8xf32>
    %5 = vector.multi_reduction <add>, %2, %cst_5 [0] : vector<512x8xf32> to vector<8xf32>
    %6 = vector.shape_cast %5 : vector<8xf32> to vector<1x8xf32>
    %7 = arith.mulf %2, %2 : vector<512x8xf32>
    %cst_6 = arith.constant dense<0.000000e+00> : vector<8xf32>
    %8 = vector.multi_reduction <add>, %7, %cst_6 [0] : vector<512x8xf32> to vector<8xf32>
    %9 = vector.shape_cast %8 : vector<8xf32> to vector<1x8xf32>
    %10 = vector.shape_cast %6 : vector<1x8xf32> to vector<1x8xf32>
    %11 = vector.broadcast %10 : vector<1x8xf32> to vector<8x8xf32>
    %c0_7 = arith.constant 0 : index
    %c0_8 = arith.constant 0 : index
    %12 = vector.load %arg4[%c0_7, %c0_8] : memref<8x8xf32, #tpu.memory_space<vmem>>, vector<8x8xf32>
    tpu.vector_store %arg4[%c0_7, %c0_8], %11 {strides = array<i32>} : memref<8x8xf32, #tpu.memory_space<vmem>>, vector<8x8xf32>,
    %13 = vector.shape_cast %9 : vector<1x8xf32> to vector<1x8xf32>
    %14 = vector.broadcast %13 : vector<1x8xf32> to vector<8x8xf32>
    %c0_9 = arith.constant 0 : index
    %c0_10 = arith.constant 0 : index
    %15 = vector.load %arg5[%c0_9, %c0_10] : memref<8x8xf32, #tpu.memory_space<vmem>>, vector<8x8xf32>
    tpu.vector_store %arg5[%c0_9, %c0_10], %14 {strides = array<i32>} : memref<8x8xf32, #tpu.memory_space<vmem>>, vector<8x8xf32>,
    return
  }
  func.func @transform_0(%arg0: i32) -> (i32, i32) {
    %c0_i32 = arith.constant 0 : i32
    %c0_i32_0 = arith.constant 0 : i32
    return %arg0, %c0_i32 : i32, i32
  }
  func.func @transform_1(%arg0: i32) -> (i32, i32) {
    %c0_i32 = arith.constant 0 : i32
    %c0_i32_0 = arith.constant 0 : i32
    %c0_i32_1 = arith.constant 0 : i32
    return %c0_i32, %c0_i32_0 : i32, i32
  }
  func.func @transform_2(%arg0: i32) -> (i32, i32) {
    %c0_i32 = arith.constant 0 : i32
    %c0_i32_0 = arith.constant 0 : i32
    return %arg0, %c0_i32 : i32, i32
  }
  func.func @transform_3(%arg0: i32) -> (i32, i32) {
    %c0_i32 = arith.constant 0 : i32
    %c0_i32_0 = arith.constant 0 : i32
    return %arg0, %c0_i32 : i32, i32
  }
  func.func @transform_4(%arg0: i32) -> (i32, i32) {
    %c0_i32 = arith.constant 0 : i32
    %c0_i32_0 = arith.constant 0 : i32
    return %arg0, %c0_i32 : i32, i32
  }
}

module attributes {stable_mosaic.version = 11 : i64} {
  func.func @_bn_relu_kernel(%arg0: i32, %arg1: memref<32x128xbf16, #tpu.memory_space<vmem>>, %arg2: memref<1x128xf32, #tpu.memory_space<vmem>>, %arg3: memref<1x128xf32, #tpu.memory_space<vmem>>, %arg4: memref<32x128xf32, #tpu.memory_space<vmem>>) attributes {dimension_semantics = [#tpu.dimension_semantics<parallel>], iteration_bounds = array<i64: 2>, scalar_prefetch = 0 : i64, scratch_operands = 0 : i64, tpu.core_type = #tpu.core_type<tc>, window_params = [{transform_indices = @transform_0, window_bounds = array<i64: 32, 128>}, {pipeline_mode = #tpu.pipeline_mode<synchronous>, transform_indices = @transform_1, window_bounds = array<i64: 1, 128>}, {pipeline_mode = #tpu.pipeline_mode<synchronous>, transform_indices = @transform_2, window_bounds = array<i64: 1, 128>}, {transform_indices = @transform_3, window_bounds = array<i64: 32, 128>}]} {
    %c0 = arith.constant 0 : index
    %c0_0 = arith.constant 0 : index
    %0 = vector.load %arg1[%c0, %c0_0] : memref<32x128xbf16, #tpu.memory_space<vmem>>, vector<32x128xbf16>
    %1 = arith.extf %0 : vector<32x128xbf16> to vector<32x128xf32>
    %c0_1 = arith.constant 0 : index
    %c0_2 = arith.constant 0 : index
    %2 = vector.load %arg2[%c0_1, %c0_2] : memref<1x128xf32, #tpu.memory_space<vmem>>, vector<1x128xf32>
    %3 = vector.broadcast %2 : vector<1x128xf32> to vector<32x128xf32>
    %4 = arith.mulf %1, %3 : vector<32x128xf32>
    %c0_3 = arith.constant 0 : index
    %c0_4 = arith.constant 0 : index
    %5 = vector.load %arg3[%c0_3, %c0_4] : memref<1x128xf32, #tpu.memory_space<vmem>>, vector<1x128xf32>
    %6 = vector.broadcast %5 : vector<1x128xf32> to vector<32x128xf32>
    %7 = arith.addf %4, %6 : vector<32x128xf32>
    %cst = arith.constant 0.000000e+00 : f32
    %8 = vector.broadcast %cst : f32 to vector<32x128xf32>
    %9 = arith.maximumf %7, %8 : vector<32x128xf32>
    %c0_5 = arith.constant 0 : index
    %c0_6 = arith.constant 0 : index
    %10 = vector.load %arg4[%c0_5, %c0_6] : memref<32x128xf32, #tpu.memory_space<vmem>>, vector<32x128xf32>
    tpu.vector_store %arg4[%c0_5, %c0_6], %9 {strides = array<i32>} : memref<32x128xf32, #tpu.memory_space<vmem>>, vector<32x128xf32>,
    return
  }
  func.func @transform_0(%arg0: i32) -> (i32, i32) {
    %c0_i32 = arith.constant 0 : i32
    %c0_i32_0 = arith.constant 0 : i32
    return %arg0, %c0_i32 : i32, i32
  }
  func.func @transform_1(%arg0: i32) -> (i32, i32) {
    %c0_i32 = arith.constant 0 : i32
    %c0_i32_0 = arith.constant 0 : i32
    %c0_i32_1 = arith.constant 0 : i32
    return %c0_i32, %c0_i32_0 : i32, i32
  }
  func.func @transform_2(%arg0: i32) -> (i32, i32) {
    %c0_i32 = arith.constant 0 : i32
    %c0_i32_0 = arith.constant 0 : i32
    %c0_i32_1 = arith.constant 0 : i32
    return %c0_i32, %c0_i32_0 : i32, i32
  }
  func.func @transform_3(%arg0: i32) -> (i32, i32) {
    %c0_i32 = arith.constant 0 : i32
    %c0_i32_0 = arith.constant 0 : i32
    return %arg0, %c0_i32 : i32, i32
  }
}

</mosaic_0001>

<llo_original>
// kernel: tile.13
$region0: #{tile.13}
  #allocation0 [shape = 's32[1]{0}', space=sflag, size = 0x4, scoped, tag = 'scoped memory for tile.13']
  %s0 = inlined_call_operand.vmem [shape: f32[8], index: 0, kind: input, shape index: {}]
  %s1 = inlined_call_operand.vmem [shape: f32[16,8], index: 1, kind: output, shape index: {}]
  // Predicated region
  $region2: #{tile.13} parent=0 // pred_check
    _
  $region3: #{tile.13} parent=0 // pred_check_branch
    %3 = sbr.rel (0) target = $region5
  $region4: #{tile.13} parent=0 // pred_region
    _
  $region5: #{tile.13} parent=0 // pred_fallthru
    _
  %v4 = vld [vmem:[%s0] ss:$0 sm:$0xff]
  %5 = vst [vmem:[%s1] sm:$0xff] %v4
  %s6 = scalar_lea.vmem %s1, 8
  %7 = vst [vmem:[%s6] sm:$0xff] %v4

// kernel: tile.14
$region0: #{tile.14}
  %s0 = inlined_call_operand.vmem [shape: f32[16,8], index: 0, kind: input, shape index: {}]
  %s1 = inlined_call_operand.vmem [shape: f32[1,128], index: 1, kind: output, shape index: {}]
  $region1: #{tile.14} parent=0
    #allocation0 [shape = 'u8[4096]{0}', space=vmem, size = 0x1000, scoped, tag = 'scoped mem for output reshape']
    %v2 = vld [vmem:[%s0] sm:$0x1]
    %vm3 = vcmask 64512
    %4 = vst.msk [vmem:[#allocation0] sm:$0x1] %vm3, %v2
    %s5 = scalar_lea.vmem %s0, 15
    %v6 = vld [vmem:[%s5] sm:$0x1]
    %7 = vrot.lane.b32.xlu0 %v6, 120
    %v8 = vpop.permute.xlu0 %7
    %vm9 = vcmask 1048512
    %10 = vst.msk [vmem:[#allocation0] sm:$0x1] %vm9, %v8
    %s11 = scalar_lea.vmem %s0, 14
    %v12 = vld [vmem:[%s11] sm:$0x1]
    %13 = vrot.lane.b32.xlu0 %v12, 112
    %v14 = vpop.permute.xlu0 %13
    %vm15 = vcmask 982912
    %16 = vst.msk [vmem:[#allocation0] sm:$0x1] %vm15, %v14
    %s17 = scalar_lea.vmem %s0, 13
    %v18 = vld [vmem:[%s17] sm:$0x1]
    %19 = vrot.lane.b32.xlu0 %v18, 104
    %v20 = vpop.permute.xlu0 %19
    %vm21 = vcmask 917312
    %22 = vst.msk [vmem:[#allocation0] sm:$0x1] %vm21, %v20
    %s23 = scalar_lea.vmem %s0, 12
    %v24 = vld [vmem:[%s23] sm:$0x1]
    %25 = vrot.lane.b32.xlu0 %v24, 96
    %v26 = vpop.permute.xlu0 %25
    %vm27 = vcmask 851712
    %28 = vst.msk [vmem:[#allocation0] sm:$0x1] %vm27, %v26
    %s29 = scalar_lea.vmem %s0, 11
    %v30 = vld [vmem:[%s29] sm:$0x1]
    %31 = vrot.lane.b32.xlu0 %v30, 88
    %v32 = vpop.permute.xlu0 %31
    %vm33 = vcmask 786112
    %34 = vst.msk [vmem:[#allocation0] sm:$0x1] %vm33, %v32
    %s35 = scalar_lea.vmem %s0, 10
    %v36 = vld [vmem:[%s35] sm:$0x1]
    %37 = vrot.lane.b32.xlu0 %v36, 80
    %v38 = vpop.permute.xlu0 %37
    %vm39 = vcmask 720512
    %40 = vst.msk [vmem:[#allocation0] sm:$0x1] %vm39, %v38
    %s41 = scalar_lea.vmem %s0, 9
    %v42 = vld [vmem:[%s41] sm:$0x1]
    %43 = vrot.lane.b32.xlu0 %v42, 72
    %v44 = vpop.permute.xlu0 %43
    %vm45 = vcmask 654912
    %46 = vst.msk [vmem:[#allocation0] sm:$0x1] %vm45, %v44
    %s47 = scalar_lea.vmem %s0, 8
    %v48 = vld [vmem:[%s47] sm:$0x1]
    %49 = vrot.lane.b32.xlu0 %v48, 64
    %v50 = vpop.permute.xlu0 %49
    %vm51 = vcmask 589312
    %52 = vst.msk [vmem:[#allocation0] sm:$0x1] %vm51, %v50
    %s53 = scalar_lea.vmem %s0, 7
    %v54 = vld [vmem:[%s53] sm:$0x1]
    %55 = vrot.lane.b32.xlu0 %v54, 56
    %v56 = vpop.permute.xlu0 %55
    %vm57 = vcmask 523712
    %58 = vst.msk [vmem:[#allocation0] sm:$0x1] %vm57, %v56
    %s59 = scalar_lea.vmem %s0, 6
    %v60 = vld [vmem:[%s59] sm:$0x1]
    %61 = vrot.lane.b32.xlu0 %v60, 48
    %v62 = vpop.permute.xlu0 %61
    %vm63 = vcmask 458112
    %64 = vst.msk [vmem:[#allocation0] sm:$0x1] %vm63, %v62
    %s65 = scalar_lea.vmem %s0, 5
    %v66 = vld [vmem:[%s65] sm:$0x1]
    %67 = vrot.lane.b32.xlu0 %v66, 40
    %v68 = vpop.permute.xlu0 %67
    %vm69 = vcmask 392512
    %70 = vst.msk [vmem:[#allocation0] sm:$0x1] %vm69, %v68
    %s71 = scalar_lea.vmem %s0, 4
    %v72 = vld [vmem:[%s71] sm:$0x1]
    %73 = vrot.lane.b32.xlu0 %v72, 32
    %v74 = vpop.permute.xlu0 %73
    %vm75 = vcmask 326912
    %76 = vst.msk [vmem:[#allocation0] sm:$0x1] %vm75, %v74
    %s77 = scalar_lea.vmem %s0, 3
    %v78 = vld [vmem:[%s77] sm:$0x1]
    %79 = vrot.lane.b32.xlu0 %v78, 24
    %v80 = vpop.permute.xlu0 %79
    %vm81 = vcmask 261312
    %82 = vst.msk [vmem:[#allocation0] sm:$0x1] %vm81, %v80
    %s83 = scalar_lea.vmem %s0, 2
    %v84 = vld [vmem:[%s83] sm:$0x1]
    %85 = vrot.lane.b32.xlu0 %v84, 16
    %v86 = vpop.permute.xlu0 %85
    %vm87 = vcmask 195712
    %88 = vst.msk [vmem:[#allocation0] sm:$0x1] %vm87, %v86
    %s89 = scalar_lea.vmem %s0, 1
    %v90 = vld [vmem:[%s89] sm:$0x1]
    %91 = vrot.lane.b32.xlu0 %v90, 8
    %v92 = vpop.permute.xlu0 %91
    %vm93 = vcmask 130112
    %94 = vst.msk [vmem:[#allocation0] sm:$0x1] %vm93, %v92
    %s96 = ssub.s32 2, 1
    %v97 = vld [vmem:[#allocation0] sm:%s96]
    %s99 = ssub.s32 2, 1
    %100 = vst [vmem:[%s1] sm:%s99] %v97

// kernel: conv3d_bn_relu.2
$region0: #{conv3d_bn_relu.2}
  #allocation0 [shape = 'u32[]', space=smem, size = 0x4, offset = 0x4, fixed_abs, tag = 'smem constant byte address 0x4 - core index']
  #allocation1 [shape = 'u32[72,128]{1,0:T(1,128)}', space=vmem, size = 0x9000, scoped, tag = 'internal scratch']
  %s0 = inlined_call_operand.vmem [shape: bf16[1024,128], index: 0, kind: input, shape index: {}]
  %s1 = inlined_call_operand.vmem [shape: bf16[128,8], index: 1, kind: input, shape index: {}]
  %s2 = inlined_call_operand.vmem [shape: bf16[1024,8], index: 2, kind: output, shape index: {0}]
  %s3 = inlined_call_operand.vmem [shape: f32[16,8], index: 3, kind: output, shape index: {1}]
  %s4 = inlined_call_operand.vmem [shape: f32[16,8], index: 4, kind: output, shape index: {2}]
  %5 = xla_tuple %s2, %s3, %s4
  %s6 = sld [smem:[#allocation0]]
  $region57: #{conv3d_bn_relu.2} parent=0
    _
  %s8 = ssub.s32 1, %s6
  %s9 = scalar_select 0, %s8, %s6
  loop: start=0, step=1, limit=4
  $region2: #{conv3d_bn_relu.2} parent=0 // loop_pre_header
    _
  $region3: #{conv3d_bn_relu.2} parent=0 // loop_header
    %s11 = sphi 0, %s15
    %p12 = scmp.ge.s32.totalorder %s11, 4
    %s21 = sphi 0, %s23
    %s24 = sphi 0, %s21
    %s25 = sphi 0, %s24
    %s41 = sphi 0, %s25
    %s45 = sphi 0, %s45
    %s47 = sphi 0, %s45
    %s48 = sphi 0, %s47
    %s62 = sphi 0, %s48
    %s68 = sphi 0, %s70
    %s71 = sphi 0, %s68
    %s72 = sphi 0, %s71
    %s88 = sphi 0, %s72
    %s94 = sphi 0, %s96
    %s97 = sphi 0, %s94
    %s98 = sphi 0, %s97
    %s114 = sphi 0, %s98
    %s120 = sphi 0, %s122
    %s123 = sphi 0, %s120
    %s124 = sphi 0, %s123
    %s140 = sphi 0, %s124
  $region4: #{conv3d_bn_relu.2} parent=0 // loop_header_branch
    %14 = sbr.rel (%p12) target = $region8
  $region5: #{conv3d_bn_relu.2} parent=0 // loop_body
    %s16 = ssub.s32 %s11, 1
    %s17 = ssub.s32 %s11, 2
    %s18 = sadd.s32 %s11, 1
    %s19 = ssub.s32 %s11, %s18
    %p20 = scmp.eq.s32.totalorder %s19, 0
    %s22 = sadd.s32 %s21, 1
    %s23 = scalar_select %p20, %s21, %s22
    %p26 = pneg %p20
    %p27 = scmp.eq.s32.totalorder %s11, 1
    %p28 = por %p26, %p27
    %p29 = scmp.ne.s32.totalorder %s21, %s24
    %p30 = scmp.eq.s32.totalorder %s11, 0
    %p31 = por %p29, %p30
    %p32 = scmp.ne.s32.totalorder %s21, %s24
    %p33 = scmp.eq.s32.totalorder %s16, 1
    %p34 = por %p32, %p33
    %p35 = scmp.ne.s32.totalorder %s24, %s25
    %p36 = scmp.eq.s32.totalorder %s16, 0
    %p37 = por %p35, %p36
    %p38 = scmp.ne.s32.totalorder %s24, %s25
    %p39 = scmp.eq.s32.totalorder %s17, 1
    %p40 = por %p38, %p39
    %p42 = scmp.ne.s32.totalorder %s25, %s41
    %p43 = scmp.eq.s32.totalorder %s17, 0
    %p44 = por %p42, %p43
    %s46 = sadd.s32 %s45, 1
    %p49 = scmp.eq.s32.totalorder %s11, 1
    %p50 = scmp.ne.s32.totalorder %s45, %s47
    %p51 = scmp.eq.s32.totalorder %s11, 0
    %p52 = por %p50, %p51
    %p53 = scmp.ne.s32.totalorder %s45, %s47
    %p54 = scmp.eq.s32.totalorder %s16, 1
    %p55 = por %p53, %p54
    %p56 = scmp.ne.s32.totalorder %s47, %s48
    %p57 = scmp.eq.s32.totalorder %s16, 0
    %p58 = por %p56, %p57
    %p59 = scmp.ne.s32.totalorder %s47, %s48
    %p60 = scmp.eq.s32.totalorder %s17, 1
    %p61 = por %p59, %p60
    %p63 = scmp.ne.s32.totalorder %s48, %s62
    %p64 = scmp.eq.s32.totalorder %s17, 0
    %p65 = por %p63, %p64
    %s66 = ssub.s32 %s11, %s18
    %p67 = scmp.eq.s32.totalorder %s66, 0
    %s69 = sadd.s32 %s68, 1
    %s70 = scalar_select %p67, %s68, %s69
    %p73 = pneg %p67
    %p74 = scmp.eq.s32.totalorder %s11, 1
    %p75 = por %p73, %p74
    %p76 = scmp.ne.s32.totalorder %s68, %s71
    %p77 = scmp.eq.s32.totalorder %s11, 0
    %p78 = por %p76, %p77
    %p79 = scmp.ne.s32.totalorder %s68, %s71
    %p80 = scmp.eq.s32.totalorder %s16, 1
    %p81 = por %p79, %p80
    %p82 = scmp.ne.s32.totalorder %s71, %s72
    %p83 = scmp.eq.s32.totalorder %s16, 0
    %p84 = por %p82, %p83
    %p85 = scmp.ne.s32.totalorder %s71, %s72
    %p86 = scmp.eq.s32.totalorder %s17, 1
    %p87 = por %p85, %p86
    %p89 = scmp.ne.s32.totalorder %s72, %s88
    %p90 = scmp.eq.s32.totalorder %s17, 0
    %p91 = por %p89, %p90
    %s92 = ssub.s32 %s11, %s18
    %p93 = scmp.eq.s32.totalorder %s92, 0
    %s95 = sadd.s32 %s94, 1
    %s96 = scalar_select %p93, %s94, %s95
    %p99 = pneg %p93
    %p100 = scmp.eq.s32.totalorder %s11, 1
    %p101 = por %p99, %p100
    %p102 = scmp.ne.s32.totalorder %s94, %s97
    %p103 = scmp.eq.s32.totalorder %s11, 0
    %p104 = por %p102, %p103
    %p105 = scmp.ne.s32.totalorder %s94, %s97
    %p106 = scmp.eq.s32.totalorder %s16, 1
    %p107 = por %p105, %p106
    %p108 = scmp.ne.s32.totalorder %s97, %s98
    %p109 = scmp.eq.s32.totalorder %s16, 0
    %p110 = por %p108, %p109
    %p111 = scmp.ne.s32.totalorder %s97, %s98
    %p112 = scmp.eq.s32.totalorder %s17, 1
    %p113 = por %p111, %p112
    %p115 = scmp.ne.s32.totalorder %s98, %s114
    %p116 = scmp.eq.s32.totalorder %s17, 0
    %p117 = por %p115, %p116
    %s118 = ssub.s32 %s11, %s18
    %p119 = scmp.eq.s32.totalorder %s118, 0
    %s121 = sadd.s32 %s120, 1
    %s122 = scalar_select %p119, %s120, %s121
    %p125 = pneg %p119
    %p126 = scmp.eq.s32.totalorder %s11, 1
    %p127 = por %p125, %p126
    %p128 = scmp.ne.s32.totalorder %s120, %s123
    %p129 = scmp.eq.s32.totalorder %s11, 0
    %p130 = por %p128, %p129
    %p131 = scmp.ne.s32.totalorder %s120, %s123
    %p132 = scmp.eq.s32.totalorder %s16, 1
    %p133 = por %p131, %p132
    %p134 = scmp.ne.s32.totalorder %s123, %s124
    %p135 = scmp.eq.s32.totalorder %s16, 0
    %p136 = por %p134, %p135
    %p137 = scmp.ne.s32.totalorder %s123, %s124
    %p138 = scmp.eq.s32.totalorder %s17, 1
    %p139 = por %p137, %p138
    %p141 = scmp.ne.s32.totalorder %s124, %s140
    %p142 = scmp.eq.s32.totalorder %s17, 0
    %p143 = por %p141, %p142
    %p144 = scmp.le.s32.totalorder 1, %s11
    %p145 = scmp.lt.s32.totalorder %s11, 3
    %p146 = pnand %p144, %p145
    %p147 = pneg %p146
    // Predicated region
    $region9: #{conv3d_bn_relu.2} parent=5 // pred_check
      _
    $region10: #{conv3d_bn_relu.2} parent=5 // pred_check_branch
      %149 = sbr.rel (%p146) target = $region12
    $region11: #{conv3d_bn_relu.2} parent=5 // pred_region
      %s150 = ssub.s32 %s11, 1
      // Predicated region
      $region13: #{conv3d_bn_relu.2} parent=11 // pred_check
        %p151 = pneg %p58
      $region14: #{conv3d_bn_relu.2} parent=11 // pred_check_branch
        %153 = sbr.rel (%p151) target = $region16
      $region15: #{conv3d_bn_relu.2} parent=11 // pred_region
        _
      $region16: #{conv3d_bn_relu.2} parent=11 // pred_fallthru
        _
    $region12: #{conv3d_bn_relu.2} parent=5 // pred_fallthru
      _
    %p154 = scmp.lt.s32.totalorder %s11, 2
    // Predicated region
    $region17: #{conv3d_bn_relu.2} parent=5 // pred_check
      %p155 = pneg %p154
    $region18: #{conv3d_bn_relu.2} parent=5 // pred_check_branch
      %157 = sbr.rel (%p155) target = $region20
    $region19: #{conv3d_bn_relu.2} parent=5 // pred_region
      // Predicated region
      $region21: #{conv3d_bn_relu.2} parent=19 // pred_check
        %p158 = pneg %p31
      $region22: #{conv3d_bn_relu.2} parent=19 // pred_check_branch
        %160 = sbr.rel (%p158) target = $region24
      $region23: #{conv3d_bn_relu.2} parent=19 // pred_region
        %s161 = smul.u32 64, %s11
        %p162 = scmp.lt.s32.totalorder %s161, 127
        %s163 = scalar_select %p162, %s161, 127
        %s164 = smul.addr %s163, 4
        %s165 = scalar_lea.vmem %s0, %s164
        %s166 = smul.u32 64, %s11
      $region24: #{conv3d_bn_relu.2} parent=19 // pred_fallthru
        _
    $region20: #{conv3d_bn_relu.2} parent=5 // pred_fallthru
      _
    %p167 = scmp.le.s32.totalorder 1, %s11
    %p168 = scmp.lt.s32.totalorder %s11, 3
    %p169 = pnand %p167, %p168
    %p170 = pneg %p169
    // Predicated region
    $region25: #{conv3d_bn_relu.2} parent=5 // pred_check
      _
    $region26: #{conv3d_bn_relu.2} parent=5 // pred_check_branch
      %172 = sbr.rel (%p169) target = $region28
    $region27: #{conv3d_bn_relu.2} parent=5 // pred_region
      %s173 = ssub.s32 %s11, 1
      %s174 = smul.u32 64, %s16
      %p175 = scmp.lt.s32.totalorder %s174, 127
      %s176 = scalar_select %p175, %s174, 127
      %s177 = smul.addr %s176, 4
      %s178 = scalar_lea.vmem %s0, %s177
      %p179 = pneg %p37
      %p180 = pneg %p34
      %p181 = pneg %p58
      %p182 = pneg %p55
      %p183 = pneg %p84
      %p184 = pneg %p81
      %s185 = smul.u32 64, %s16
      %p186 = scmp.lt.s32.totalorder %s185, 127
      %s187 = scalar_select %p186, %s185, 127
      %s188 = smul.addr %s187, 4
      %s189 = scalar_lea.vmem %s2, %s188
      %p190 = pneg %p110
      %p191 = pneg %p107
      %p192 = scmp.lt.s32.totalorder %s16, 1
      %s193 = scalar_select %p192, %s16, 1
      %s194 = smul.addr %s193, 8
      %s195 = scalar_lea.vmem %s3, %s194
      %p196 = pneg %p136
      %p197 = pneg %p133
      %p198 = scmp.lt.s32.totalorder %s16, 1
      %s199 = scalar_select %p198, %s16, 1
      %s200 = smul.addr %s199, 8
      %s201 = scalar_lea.vmem %s4, %s200
      %s202 = smul.u32 64, %s16
      %p203 = scmp.lt.s32.totalorder %s202, 127
      %s204 = scalar_select %p203, %s202, 127
      %s205 = smul.addr %s204, 4
      %s206 = scalar_lea.vmem %s0, %s205
      %s207 = smul.u32 64, %s16
      %s208 = smul.u32 64, %s16
      %p209 = scmp.lt.s32.totalorder %s208, 127
      %s210 = scalar_select %p209, %s208, 127
      %s211 = smul.addr %s210, 4
      %s212 = scalar_lea.vmem %s2, %s211
      %s213 = smul.u32 64, %s16
      %p214 = scmp.lt.s32.totalorder %s16, 1
      %s215 = scalar_select %p214, %s16, 1
      %s216 = smul.addr %s215, 8
      %s217 = scalar_lea.vmem %s3, %s216
      %p218 = scmp.lt.s32.totalorder %s16, 1
      %s219 = scalar_select %p218, %s16, 1
      %s220 = smul.addr %s219, 8
      %s221 = scalar_lea.vmem %s4, %s220
      %v222 = vld [vmem:[%s206] sm:$0xf]
      %v223 = vld [vmem:[%s206 + $0x4] sm:$0xf]
      %v224 = vld [vmem:[%s206 + $0x8] sm:$0xf]
      %v225 = vld [vmem:[%s206 + $0xc] sm:$0xf]
      %v226 = vld [vmem:[%s206 + $0x10] sm:$0xf]
      %v227 = vld [vmem:[%s206 + $0x14] sm:$0xf]
      %v228 = vld [vmem:[%s206 + $0x18] sm:$0xf]
      %v229 = vld [vmem:[%s206 + $0x1c] sm:$0xf]
      %v230 = vld [vmem:[%s206 + $0x20] sm:$0xf]
      %v231 = vld [vmem:[%s206 + $0x24] sm:$0xf]
      %v232 = vld [vmem:[%s206 + $0x28] sm:$0xf]
      %v233 = vld [vmem:[%s206 + $0x2c] sm:$0xf]
      %v234 = vld [vmem:[%s206 + $0x30] sm:$0xf]
      %v235 = vld [vmem:[%s206 + $0x34] sm:$0xf]
      %v236 = vld [vmem:[%s206 + $0x38] sm:$0xf]
      %v237 = vld [vmem:[%s206 + $0x3c] sm:$0xf]
      %v238 = vld [vmem:[%s206 + $0x40] sm:$0xf]
      %v239 = vld [vmem:[%s206 + $0x44] sm:$0xf]
      %v240 = vld [vmem:[%s206 + $0x48] sm:$0xf]
      %v241 = vld [vmem:[%s206 + $0x4c] sm:$0xf]
      %v242 = vld [vmem:[%s206 + $0x50] sm:$0xf]
      %v243 = vld [vmem:[%s206 + $0x54] sm:$0xf]
      %v244 = vld [vmem:[%s206 + $0x58] sm:$0xf]
      %v245 = vld [vmem:[%s206 + $0x5c] sm:$0xf]
      %v246 = vld [vmem:[%s206 + $0x60] sm:$0xf]
      %v247 = vld [vmem:[%s206 + $0x64] sm:$0xf]
      %v248 = vld [vmem:[%s206 + $0x68] sm:$0xf]
      %v249 = vld [vmem:[%s206 + $0x6c] sm:$0xf]
      %v250 = vld [vmem:[%s206 + $0x70] sm:$0xf]
      %v251 = vld [vmem:[%s206 + $0x74] sm:$0xf]
      %v252 = vld [vmem:[%s206 + $0x78] sm:$0xf]
      %v253 = vld [vmem:[%s206 + $0x7c] sm:$0xf]
      %v254 = vld [vmem:[%s206 + $0x80] sm:$0xf]
      %v255 = vld [vmem:[%s206 + $0x84] sm:$0xf]
      %v256 = vld [vmem:[%s206 + $0x88] sm:$0xf]
      %v257 = vld [vmem:[%s206 + $0x8c] sm:$0xf]
      %v258 = vld [vmem:[%s206 + $0x90] sm:$0xf]
      %v259 = vld [vmem:[%s206 + $0x94] sm:$0xf]
      %v260 = vld [vmem:[%s206 + $0x98] sm:$0xf]
      %v261 = vld [vmem:[%s206 + $0x9c] sm:$0xf]
      %v262 = vld [vmem:[%s206 + $0xa0] sm:$0xf]
      %v263 = vld [vmem:[%s206 + $0xa4] sm:$0xf]
      %v264 = vld [vmem:[%s206 + $0xa8] sm:$0xf]
      %v265 = vld [vmem:[%s206 + $0xac] sm:$0xf]
      %v266 = vld [vmem:[%s206 + $0xb0] sm:$0xf]
      %v267 = vld [vmem:[%s206 + $0xb4] sm:$0xf]
      %v268 = vld [vmem:[%s206 + $0xb8] sm:$0xf]
      %v269 = vld [vmem:[%s206 + $0xbc] sm:$0xf]
      %v270 = vld [vmem:[%s206 + $0xc0] sm:$0xf]
      %v271 = vld [vmem:[%s206 + $0xc4] sm:$0xf]
      %v272 = vld [vmem:[%s206 + $0xc8] sm:$0xf]
      %v273 = vld [vmem:[%s206 + $0xcc] sm:$0xf]
      %v274 = vld [vmem:[%s206 + $0xd0] sm:$0xf]
      %v275 = vld [vmem:[%s206 + $0xd4] sm:$0xf]
      %v276 = vld [vmem:[%s206 + $0xd8] sm:$0xf]
      %v277 = vld [vmem:[%s206 + $0xdc] sm:$0xf]
      %v278 = vld [vmem:[%s206 + $0xe0] sm:$0xf]
      %v279 = vld [vmem:[%s206 + $0xe4] sm:$0xf]
      %v280 = vld [vmem:[%s206 + $0xe8] sm:$0xf]
      %v281 = vld [vmem:[%s206 + $0xec] sm:$0xf]
      %v282 = vld [vmem:[%s206 + $0xf0] sm:$0xf]
      %v283 = vld [vmem:[%s206 + $0xf4] sm:$0xf]
      %v284 = vld [vmem:[%s206 + $0xf8] sm:$0xf]
      %v285 = vld [vmem:[%s206 + $0xfc] sm:$0xf]
      %v286 = vld [vmem:[%s1] sm:$0xf]
      %v287 = vld [vmem:[%s1 + $0x4] sm:$0xf]
      %v288 = vld [vmem:[%s1 + $0x8] sm:$0xf]
      %v289 = vld [vmem:[%s1 + $0xc] sm:$0xf]
      %v290 = vld [vmem:[%s1 + $0x10] sm:$0xf]
      %v291 = vld [vmem:[%s1 + $0x14] sm:$0xf]
      %v292 = vld [vmem:[%s1 + $0x18] sm:$0xf]
      %v293 = vld [vmem:[%s1 + $0x1c] sm:$0xf]
      %v294 = vld [vmem:[%s1 + $0x20] sm:$0xf]
      %v295 = vld [vmem:[%s1 + $0x24] sm:$0xf]
      %v296 = vld [vmem:[%s1 + $0x28] sm:$0xf]
      %v297 = vld [vmem:[%s1 + $0x2c] sm:$0xf]
      %v298 = vld [vmem:[%s1 + $0x30] sm:$0xf]
      %v299 = vld [vmem:[%s1 + $0x34] sm:$0xf]
      %v300 = vld [vmem:[%s1 + $0x38] sm:$0xf]
      %v301 = vld [vmem:[%s1 + $0x3c] sm:$0xf]
      %v366 = vunpack.c.l.b16 %v222
      %v367 = vunpack.c.l.b16 %v223
      %v368 = vunpack.c.l.b16 %v224
      %v369 = vunpack.c.l.b16 %v225
      %v370 = vunpack.c.l.b16 %v226
      %v371 = vunpack.c.l.b16 %v227
      %v372 = vunpack.c.l.b16 %v228
      %v373 = vunpack.c.l.b16 %v229
      %v374 = vunpack.c.l.b16 %v230
      %v375 = vunpack.c.l.b16 %v231
      %v376 = vunpack.c.l.b16 %v232
      %v377 = vunpack.c.l.b16 %v233
      %v378 = vunpack.c.l.b16 %v234
      %v379 = vunpack.c.l.b16 %v235
      %v380 = vunpack.c.l.b16 %v236
      %v381 = vunpack.c.l.b16 %v237
      %v382 = vunpack.c.l.b16 %v238
      %v383 = vunpack.c.l.b16 %v239
      %v384 = vunpack.c.l.b16 %v240
      %v385 = vunpack.c.l.b16 %v241
      %v386 = vunpack.c.l.b16 %v242
      %v387 = vunpack.c.l.b16 %v243
      %v388 = vunpack.c.l.b16 %v244
      %v389 = vunpack.c.l.b16 %v245
      %v390 = vunpack.c.l.b16 %v246
      %v391 = vunpack.c.l.b16 %v247
      %v392 = vunpack.c.l.b16 %v248
      %v393 = vunpack.c.l.b16 %v249
      %v394 = vunpack.c.l.b16 %v250
      %v395 = vunpack.c.l.b16 %v251
      %v396 = vunpack.c.l.b16 %v252
      %v397 = vunpack.c.l.b16 %v253
      %v398 = vunpack.c.l.b16 %v254
      %v399 = vunpack.c.l.b16 %v255
      %v400 = vunpack.c.l.b16 %v256
      %v401 = vunpack.c.l.b16 %v257
      %v402 = vunpack.c.l.b16 %v258
      %v403 = vunpack.c.l.b16 %v259
      %v404 = vunpack.c.l.b16 %v260
      %v405 = vunpack.c.l.b16 %v261
      %v406 = vunpack.c.l.b16 %v262
      %v407 = vunpack.c.l.b16 %v263
      %v408 = vunpack.c.l.b16 %v264
      %v409 = vunpack.c.l.b16 %v265
      %v410 = vunpack.c.l.b16 %v266
      %v411 = vunpack.c.l.b16 %v267
      %v412 = vunpack.c.l.b16 %v268
      %v413 = vunpack.c.l.b16 %v269
      %v414 = vunpack.c.l.b16 %v270
      %v415 = vunpack.c.l.b16 %v271
      %v416 = vunpack.c.l.b16 %v272
      %v417 = vunpack.c.l.b16 %v273
      %v418 = vunpack.c.l.b16 %v274
      %v419 = vunpack.c.l.b16 %v275
      %v420 = vunpack.c.l.b16 %v276
      %v421 = vunpack.c.l.b16 %v277
      %v422 = vunpack.c.l.b16 %v278
      %v423 = vunpack.c.l.b16 %v279
      %v424 = vunpack.c.l.b16 %v280
      %v425 = vunpack.c.l.b16 %v281
      %v426 = vunpack.c.l.b16 %v282
      %v427 = vunpack.c.l.b16 %v283
      %v428 = vunpack.c.l.b16 %v284
      %v429 = vunpack.c.l.b16 %v285
      %v430 = vpack.c.b16 %v367, %v366
      %v431 = vpack.c.b16 %v369, %v368
      %v432 = vpack.c.b16 %v371, %v370
      %v433 = vpack.c.b16 %v373, %v372
      %v434 = vpack.c.b16 %v375, %v374
      %v435 = vpack.c.b16 %v377, %v376
      %v436 = vpack.c.b16 %v379, %v378
      %v437 = vpack.c.b16 %v381, %v380
      %v438 = vpack.c.b16 %v383, %v382
      %v439 = vpack.c.b16 %v385, %v384
      %v440 = vpack.c.b16 %v387, %v386
      %v441 = vpack.c.b16 %v389, %v388
      %v442 = vpack.c.b16 %v391, %v390
      %v443 = vpack.c.b16 %v393, %v392
      %v444 = vpack.c.b16 %v395, %v394
      %v445 = vpack.c.b16 %v397, %v396
      %v446 = vpack.c.b16 %v399, %v398
      %v447 = vpack.c.b16 %v401, %v400
      %v448 = vpack.c.b16 %v403, %v402
      %v449 = vpack.c.b16 %v405, %v404
      %v450 = vpack.c.b16 %v407, %v406
      %v451 = vpack.c.b16 %v409, %v408
      %v452 = vpack.c.b16 %v411, %v410
      %v453 = vpack.c.b16 %v413, %v412
      %v454 = vpack.c.b16 %v415, %v414
      %v455 = vpack.c.b16 %v417, %v416
      %v456 = vpack.c.b16 %v419, %v418
      %v457 = vpack.c.b16 %v421, %v420
      %v458 = vpack.c.b16 %v423, %v422
      %v459 = vpack.c.b16 %v425, %v424
      %v460 = vpack.c.b16 %v427, %v426
      %v461 = vpack.c.b16 %v429, %v428
      %v510 = vunpack.c.l.b16 %v286
      %v511 = vunpack.c.l.b16 %v287
      %v512 = vunpack.c.l.b16 %v288
      %v513 = vunpack.c.l.b16 %v289
      %v514 = vunpack.c.l.b16 %v290
      %v515 = vunpack.c.l.b16 %v291
      %v516 = vunpack.c.l.b16 %v292
      %v517 = vunpack.c.l.b16 %v293
      %v518 = vunpack.c.l.b16 %v294
      %v519 = vunpack.c.l.b16 %v295
      %v520 = vunpack.c.l.b16 %v296
      %v521 = vunpack.c.l.b16 %v297
      %v522 = vunpack.c.l.b16 %v298
      %v523 = vunpack.c.l.b16 %v299
      %v524 = vunpack.c.l.b16 %v300
      %v525 = vunpack.c.l.b16 %v301
      %v526 = vpack.c.b16 %v511, %v510
      %v527 = vpack.c.b16 %v513, %v512
      %v528 = vpack.c.b16 %v515, %v514
      %v529 = vpack.c.b16 %v517, %v516
      %v530 = vpack.c.b16 %v519, %v518
      %v531 = vpack.c.b16 %v521, %v520
      %v532 = vpack.c.b16 %v523, %v522
      %v533 = vpack.c.b16 %v525, %v524
      %542 = vmatpush.bf16.msra.mxu0 %v533
      %543 = vmatpush.bf16.msra.mxu0 %v532
      %544 = vmatpush.bf16.msra.mxu0 %v531
      %545 = vmatpush.bf16.msra.mxu0 %v530
      %546 = vmatpush.bf16.msra.mxu0 %v529
      %547 = vmatpush.bf16.msra.mxu0 %v528
      %548 = vmatpush.bf16.msra.mxu0 %v527
      %549 = vmatpush.bf16.msra.mxu0 %v526
      %550 = vmatmul.bf16.gmra.mxu0 %v430
      %v551 = vpop.f32.mrf.mxu0
      %v552 = vadd.f32 0.0, %v551
      %v553 = vpop.f32.mrf.mxu0
      %v554 = vadd.f32 0.0, %v553
      %555 = vmatmul.bf16.gmra.mxu0 %v431
      %v556 = vpop.f32.mrf.mxu0
      %v557 = vadd.f32 0.0, %v556
      %v558 = vpop.f32.mrf.mxu0
      %v559 = vadd.f32 0.0, %v558
      %560 = vmatmul.bf16.gmra.mxu0 %v432
      %v561 = vpop.f32.mrf.mxu0
      %v562 = vadd.f32 0.0, %v561
      %v563 = vpop.f32.mrf.mxu0
      %v564 = vadd.f32 0.0, %v563
      %565 = vmatmul.bf16.gmra.mxu0 %v433
      %v566 = vpop.f32.mrf.mxu0
      %v567 = vadd.f32 0.0, %v566
      %v568 = vpop.f32.mrf.mxu0
      %v569 = vadd.f32 0.0, %v568
      %570 = vmatmul.bf16.gmra.mxu0 %v434
      %v571 = vpop.f32.mrf.mxu0
      %v572 = vadd.f32 0.0, %v571
      %v573 = vpop.f32.mrf.mxu0
      %v574 = vadd.f32 0.0, %v573
      %575 = vmatmul.bf16.gmra.mxu0 %v435
      %v576 = vpop.f32.mrf.mxu0
      %v577 = vadd.f32 0.0, %v576
      %v578 = vpop.f32.mrf.mxu0
      %v579 = vadd.f32 0.0, %v578
      %580 = vmatmul.bf16.gmra.mxu0 %v436
      %v581 = vpop.f32.mrf.mxu0
      %v582 = vadd.f32 0.0, %v581
      %v583 = vpop.f32.mrf.mxu0
      %v584 = vadd.f32 0.0, %v583
      %585 = vmatmul.bf16.gmra.mxu0 %v437
      %v586 = vpop.f32.mrf.mxu0
      %v587 = vadd.f32 0.0, %v586
      %v588 = vpop.f32.mrf.mxu0
      %v589 = vadd.f32 0.0, %v588
      %590 = vmatmul.bf16.gmra.mxu0 %v438
      %v591 = vpop.f32.mrf.mxu0
      %v592 = vadd.f32 0.0, %v591
      %v593 = vpop.f32.mrf.mxu0
      %v594 = vadd.f32 0.0, %v593
      %595 = vmatmul.bf16.gmra.mxu0 %v439
      %v596 = vpop.f32.mrf.mxu0
      %v597 = vadd.f32 0.0, %v596
      %v598 = vpop.f32.mrf.mxu0
      %v599 = vadd.f32 0.0, %v598
      %600 = vmatmul.bf16.gmra.mxu0 %v440
      %v601 = vpop.f32.mrf.mxu0
      %v602 = vadd.f32 0.0, %v601
      %v603 = vpop.f32.mrf.mxu0
      %v604 = vadd.f32 0.0, %v603
      %605 = vmatmul.bf16.gmra.mxu0 %v441
      %v606 = vpop.f32.mrf.mxu0
      %v607 = vadd.f32 0.0, %v606
      %v608 = vpop.f32.mrf.mxu0
      %v609 = vadd.f32 0.0, %v608
      %610 = vmatmul.bf16.gmra.mxu0 %v442
      %v611 = vpop.f32.mrf.mxu0
      %v612 = vadd.f32 0.0, %v611
      %v613 = vpop.f32.mrf.mxu0
      %v614 = vadd.f32 0.0, %v613
      %615 = vmatmul.bf16.gmra.mxu0 %v443
      %v616 = vpop.f32.mrf.mxu0
      %v617 = vadd.f32 0.0, %v616
      %v618 = vpop.f32.mrf.mxu0
      %v619 = vadd.f32 0.0, %v618
      %620 = vmatmul.bf16.gmra.mxu0 %v444
      %v621 = vpop.f32.mrf.mxu0
      %v622 = vadd.f32 0.0, %v621
      %v623 = vpop.f32.mrf.mxu0
      %v624 = vadd.f32 0.0, %v623
      %625 = vmatmul.bf16.gmra.mxu0 %v445
      %v626 = vpop.f32.mrf.mxu0
      %v627 = vadd.f32 0.0, %v626
      %v628 = vpop.f32.mrf.mxu0
      %v629 = vadd.f32 0.0, %v628
      %630 = vmatmul.bf16.gmra.mxu0 %v446
      %v631 = vpop.f32.mrf.mxu0
      %v632 = vadd.f32 0.0, %v631
      %v633 = vpop.f32.mrf.mxu0
      %v634 = vadd.f32 0.0, %v633
      %635 = vmatmul.bf16.gmra.mxu0 %v447
      %v636 = vpop.f32.mrf.mxu0
      %v637 = vadd.f32 0.0, %v636
      %v638 = vpop.f32.mrf.mxu0
      %v639 = vadd.f32 0.0, %v638
      %640 = vmatmul.bf16.gmra.mxu0 %v448
      %v641 = vpop.f32.mrf.mxu0
      %v642 = vadd.f32 0.0, %v641
      %v643 = vpop.f32.mrf.mxu0
      %v644 = vadd.f32 0.0, %v643
      %645 = vmatmul.bf16.gmra.mxu0 %v449
      %v646 = vpop.f32.mrf.mxu0
      %v647 = vadd.f32 0.0, %v646
      %v648 = vpop.f32.mrf.mxu0
      %v649 = vadd.f32 0.0, %v648
      %650 = vmatmul.bf16.gmra.mxu0 %v450
      %v651 = vpop.f32.mrf.mxu0
      %v652 = vadd.f32 0.0, %v651
      %v653 = vpop.f32.mrf.mxu0
      %v654 = vadd.f32 0.0, %v653
      %655 = vmatmul.bf16.gmra.mxu0 %v451
      %v656 = vpop.f32.mrf.mxu0
      %v657 = vadd.f32 0.0, %v656
      %v658 = vpop.f32.mrf.mxu0
      %v659 = vadd.f32 0.0, %v658
      %660 = vmatmul.bf16.gmra.mxu0 %v452
      %v661 = vpop.f32.mrf.mxu0
      %v662 = vadd.f32 0.0, %v661
      %v663 = vpop.f32.mrf.mxu0
      %v664 = vadd.f32 0.0, %v663
      %665 = vmatmul.bf16.gmra.mxu0 %v453
      %v666 = vpop.f32.mrf.mxu0
      %v667 = vadd.f32 0.0, %v666
      %v668 = vpop.f32.mrf.mxu0
      %v669 = vadd.f32 0.0, %v668
      %670 = vmatmul.bf16.gmra.mxu0 %v454
      %v671 = vpop.f32.mrf.mxu0
      %v672 = vadd.f32 0.0, %v671
      %v673 = vpop.f32.mrf.mxu0
      %v674 = vadd.f32 0.0, %v673
      %675 = vmatmul.bf16.gmra.mxu0 %v455
      %v676 = vpop.f32.mrf.mxu0
      %v677 = vadd.f32 0.0, %v676
      %v678 = vpop.f32.mrf.mxu0
      %v679 = vadd.f32 0.0, %v678
      %680 = vmatmul.bf16.gmra.mxu0 %v456
      %v681 = vpop.f32.mrf.mxu0
      %v682 = vadd.f32 0.0, %v681
      %v683 = vpop.f32.mrf.mxu0
      %v684 = vadd.f32 0.0, %v683
      %685 = vmatmul.bf16.gmra.mxu0 %v457
      %v686 = vpop.f32.mrf.mxu0
      %v687 = vadd.f32 0.0, %v686
      %v688 = vpop.f32.mrf.mxu0
      %v689 = vadd.f32 0.0, %v688
      %690 = vmatmul.bf16.gmra.mxu0 %v458
      %v691 = vpop.f32.mrf.mxu0
      %v692 = vadd.f32 0.0, %v691
      %v693 = vpop.f32.mrf.mxu0
      %v694 = vadd.f32 0.0, %v693
      %695 = vmatmul.bf16.gmra.mxu0 %v459
      %v696 = vpop.f32.mrf.mxu0
      %v697 = vadd.f32 0.0, %v696
      %v698 = vpop.f32.mrf.mxu0
      %v699 = vadd.f32 0.0, %v698
      %700 = vmatmul.bf16.gmra.mxu0 %v460
      %v701 = vpop.f32.mrf.mxu0
      %v702 = vadd.f32 0.0, %v701
      %v703 = vpop.f32.mrf.mxu0
      %v704 = vadd.f32 0.0, %v703
      %705 = vmatmul.bf16.gmra.mxu0 %v461
      %v706 = vpop.f32.mrf.mxu0
      %v707 = vadd.f32 0.0, %v706
      %v708 = vpop.f32.mrf.mxu0
      %v709 = vadd.f32 0.0, %v708
      %710 = vdwg.mxu0
      %v711 = vpack.c.bf16 %v552, %v552
      %v712 = vpack.c.bf16 %v554, %v554
      %v713 = vpack.c.bf16 %v557, %v557
      %v714 = vpack.c.bf16 %v559, %v559
      %v715 = vpack.c.bf16 %v562, %v562
      %v716 = vpack.c.bf16 %v564, %v564
      %v717 = vpack.c.bf16 %v567, %v567
      %v718 = vpack.c.bf16 %v569, %v569
      %v719 = vpack.c.bf16 %v572, %v572
      %v720 = vpack.c.bf16 %v574, %v574
      %v721 = vpack.c.bf16 %v577, %v577
      %v722 = vpack.c.bf16 %v579, %v579
      %v723 = vpack.c.bf16 %v582, %v582
      %v724 = vpack.c.bf16 %v584, %v584
      %v725 = vpack.c.bf16 %v587, %v587
      %v726 = vpack.c.bf16 %v589, %v589
      %v727 = vpack.c.bf16 %v592, %v592
      %v728 = vpack.c.bf16 %v594, %v594
      %v729 = vpack.c.bf16 %v597, %v597
      %v730 = vpack.c.bf16 %v599, %v599
      %v731 = vpack.c.bf16 %v602, %v602
      %v732 = vpack.c.bf16 %v604, %v604
      %v733 = vpack.c.bf16 %v607, %v607
      %v734 = vpack.c.bf16 %v609, %v609
      %v735 = vpack.c.bf16 %v612, %v612
      %v736 = vpack.c.bf16 %v614, %v614
      %v737 = vpack.c.bf16 %v617, %v617
      %v738 = vpack.c.bf16 %v619, %v619
      %v739 = vpack.c.bf16 %v622, %v622
      %v740 = vpack.c.bf16 %v624, %v624
      %v741 = vpack.c.bf16 %v627, %v627
      %v742 = vpack.c.bf16 %v629, %v629
      %v743 = vpack.c.bf16 %v632, %v632
      %v744 = vpack.c.bf16 %v634, %v634
      %v745 = vpack.c.bf16 %v637, %v637
      %v746 = vpack.c.bf16 %v639, %v639
      %v747 = vpack.c.bf16 %v642, %v642
      %v748 = vpack.c.bf16 %v644, %v644
      %v749 = vpack.c.bf16 %v647, %v647
      %v750 = vpack.c.bf16 %v649, %v649
      %v751 = vpack.c.bf16 %v652, %v652
      %v752 = vpack.c.bf16 %v654, %v654
      %v753 = vpack.c.bf16 %v657, %v657
      %v754 = vpack.c.bf16 %v659, %v659
      %v755 = vpack.c.bf16 %v662, %v662
      %v756 = vpack.c.bf16 %v664, %v664
      %v757 = vpack.c.bf16 %v667, %v667
      %v758 = vpack.c.bf16 %v669, %v669
      %v759 = vpack.c.bf16 %v672, %v672
      %v760 = vpack.c.bf16 %v674, %v674
      %v761 = vpack.c.bf16 %v677, %v677
      %v762 = vpack.c.bf16 %v679, %v679
      %v763 = vpack.c.bf16 %v682, %v682
      %v764 = vpack.c.bf16 %v684, %v684
      %v765 = vpack.c.bf16 %v687, %v687
      %v766 = vpack.c.bf16 %v689, %v689
      %v767 = vpack.c.bf16 %v692, %v692
      %v768 = vpack.c.bf16 %v694, %v694
      %v769 = vpack.c.bf16 %v697, %v697
      %v770 = vpack.c.bf16 %v699, %v699
      %v771 = vpack.c.bf16 %v702, %v702
      %v772 = vpack.c.bf16 %v704, %v704
      %v773 = vpack.c.bf16 %v707, %v707
      %v774 = vpack.c.bf16 %v709, %v709
      %vm775 = vcmask 60416
      %776 = vst.msk [vmem:[%s212] sm:$0xf] %vm775, %v711
      %777 = vst.msk [vmem:[%s212 + $0x4] sm:$0xf] %vm775, %v712
      %778 = vst.msk [vmem:[%s212 + $0x8] sm:$0xf] %vm775, %v713
      %779 = vst.msk [vmem:[%s212 + $0xc] sm:$0xf] %vm775, %v714
      %780 = vst.msk [vmem:[%s212 + $0x10] sm:$0xf] %vm775, %v715
      %781 = vst.msk [vmem:[%s212 + $0x14] sm:$0xf] %vm775, %v716
      %782 = vst.msk [vmem:[%s212 + $0x18] sm:$0xf] %vm775, %v717
      %783 = vst.msk [vmem:[%s212 + $0x1c] sm:$0xf] %vm775, %v718
      %784 = vst.msk [vmem:[%s212 + $0x20] sm:$0xf] %vm775, %v719
      %785 = vst.msk [vmem:[%s212 + $0x24] sm:$0xf] %vm775, %v720
      %786 = vst.msk [vmem:[%s212 + $0x28] sm:$0xf] %vm775, %v721
      %787 = vst.msk [vmem:[%s212 + $0x2c] sm:$0xf] %vm775, %v722
      %788 = vst.msk [vmem:[%s212 + $0x30] sm:$0xf] %vm775, %v723
      %789 = vst.msk [vmem:[%s212 + $0x34] sm:$0xf] %vm775, %v724
      %790 = vst.msk [vmem:[%s212 + $0x38] sm:$0xf] %vm775, %v725
      %791 = vst.msk [vmem:[%s212 + $0x3c] sm:$0xf] %vm775, %v726
      %792 = vst.msk [vmem:[%s212 + $0x40] sm:$0xf] %vm775, %v727
      %793 = vst.msk [vmem:[%s212 + $0x44] sm:$0xf] %vm775, %v728
      %794 = vst.msk [vmem:[%s212 + $0x48] sm:$0xf] %vm775, %v729
      %795 = vst.msk [vmem:[%s212 + $0x4c] sm:$0xf] %vm775, %v730
      %796 = vst.msk [vmem:[%s212 + $0x50] sm:$0xf] %vm775, %v731
      %797 = vst.msk [vmem:[%s212 + $0x54] sm:$0xf] %vm775, %v732
      %798 = vst.msk [vmem:[%s212 + $0x58] sm:$0xf] %vm775, %v733
      %799 = vst.msk [vmem:[%s212 + $0x5c] sm:$0xf] %vm775, %v734
      %800 = vst.msk [vmem:[%s212 + $0x60] sm:$0xf] %vm775, %v735
      %801 = vst.msk [vmem:[%s212 + $0x64] sm:$0xf] %vm775, %v736
      %802 = vst.msk [vmem:[%s212 + $0x68] sm:$0xf] %vm775, %v737
      %803 = vst.msk [vmem:[%s212 + $0x6c] sm:$0xf] %vm775, %v738
      %804 = vst.msk [vmem:[%s212 + $0x70] sm:$0xf] %vm775, %v739
      %805 = vst.msk [vmem:[%s212 + $0x74] sm:$0xf] %vm775, %v740
      %806 = vst.msk [vmem:[%s212 + $0x78] sm:$0xf] %vm775, %v741
      %807 = vst.msk [vmem:[%s212 + $0x7c] sm:$0xf] %vm775, %v742
      %808 = vst.msk [vmem:[%s212 + $0x80] sm:$0xf] %vm775, %v743
      %809 = vst.msk [vmem:[%s212 + $0x84] sm:$0xf] %vm775, %v744
      %810 = vst.msk [vmem:[%s212 + $0x88] sm:$0xf] %vm775, %v745
      %811 = vst.msk [vmem:[%s212 + $0x8c] sm:$0xf] %vm775, %v746
      %812 = vst.msk [vmem:[%s212 + $0x90] sm:$0xf] %vm775, %v747
      %813 = vst.msk [vmem:[%s212 + $0x94] sm:$0xf] %vm775, %v748
      %814 = vst.msk [vmem:[%s212 + $0x98] sm:$0xf] %vm775, %v749
      %815 = vst.msk [vmem:[%s212 + $0x9c] sm:$0xf] %vm775, %v750
      %816 = vst.msk [vmem:[%s212 + $0xa0] sm:$0xf] %vm775, %v751
      %817 = vst.msk [vmem:[%s212 + $0xa4] sm:$0xf] %vm775, %v752
      %818 = vst.msk [vmem:[%s212 + $0xa8] sm:$0xf] %vm775, %v753
      %819 = vst.msk [vmem:[%s212 + $0xac] sm:$0xf] %vm775, %v754
      %820 = vst.msk [vmem:[%s212 + $0xb0] sm:$0xf] %vm775, %v755
      %821 = vst.msk [vmem:[%s212 + $0xb4] sm:$0xf] %vm775, %v756
      %822 = vst.msk [vmem:[%s212 + $0xb8] sm:$0xf] %vm775, %v757
      %823 = vst.msk [vmem:[%s212 + $0xbc] sm:$0xf] %vm775, %v758
      %824 = vst.msk [vmem:[%s212 + $0xc0] sm:$0xf] %vm775, %v759
      %825 = vst.msk [vmem:[%s212 + $0xc4] sm:$0xf] %vm775, %v760
      %826 = vst.msk [vmem:[%s212 + $0xc8] sm:$0xf] %vm775, %v761
      %827 = vst.msk [vmem:[%s212 + $0xcc] sm:$0xf] %vm775, %v762
      %828 = vst.msk [vmem:[%s212 + $0xd0] sm:$0xf] %vm775, %v763
      %829 = vst.msk [vmem:[%s212 + $0xd4] sm:$0xf] %vm775, %v764
      %830 = vst.msk [vmem:[%s212 + $0xd8] sm:$0xf] %vm775, %v765
      %831 = vst.msk [vmem:[%s212 + $0xdc] sm:$0xf] %vm775, %v766
      %832 = vst.msk [vmem:[%s212 + $0xe0] sm:$0xf] %vm775, %v767
      %833 = vst.msk [vmem:[%s212 + $0xe4] sm:$0xf] %vm775, %v768
      %834 = vst.msk [vmem:[%s212 + $0xe8] sm:$0xf] %vm775, %v769
      %835 = vst.msk [vmem:[%s212 + $0xec] sm:$0xf] %vm775, %v770
      %836 = vst.msk [vmem:[%s212 + $0xf0] sm:$0xf] %vm775, %v771
      %837 = vst.msk [vmem:[%s212 + $0xf4] sm:$0xf] %vm775, %v772
      %838 = vst.msk [vmem:[%s212 + $0xf8] sm:$0xf] %vm775, %v773
      %839 = vst.msk [vmem:[%s212 + $0xfc] sm:$0xf] %vm775, %v774
      %vm840 = vcmask 64512
      %v841 = vsel %vm840, %v552, 0.0
      %v842 = vsel %vm840, %v554, 0.0
      %v843 = vadd.f32 %v841, %v842
      %v844 = vsel %vm840, %v557, 0.0
      %v845 = vadd.f32 %v843, %v844
      %v846 = vsel %vm840, %v559, 0.0
      %v847 = vadd.f32 %v845, %v846
      %v848 = vsel %vm840, %v562, 0.0
      %v849 = vadd.f32 %v847, %v848
      %v850 = vsel %vm840, %v564, 0.0
      %v851 = vadd.f32 %v849, %v850
      %v852 = vsel %vm840, %v567, 0.0
      %v853 = vadd.f32 %v851, %v852
      %v854 = vsel %vm840, %v569, 0.0
      %v855 = vadd.f32 %v853, %v854
      %v856 = vsel %vm840, %v572, 0.0
      %v857 = vadd.f32 %v855, %v856
      %v858 = vsel %vm840, %v574, 0.0
      %v859 = vadd.f32 %v857, %v858
      %v860 = vsel %vm840, %v577, 0.0
      %v861 = vadd.f32 %v859, %v860
      %v862 = vsel %vm840, %v579, 0.0
      %v863 = vadd.f32 %v861, %v862
      %v864 = vsel %vm840, %v582, 0.0
      %v865 = vadd.f32 %v863, %v864
      %v866 = vsel %vm840, %v584, 0.0
      %v867 = vadd.f32 %v865, %v866
      %v868 = vsel %vm840, %v587, 0.0
      %v869 = vadd.f32 %v867, %v868
      %v870 = vsel %vm840, %v589, 0.0
      %v871 = vadd.f32 %v869, %v870
      %v872 = vsel %vm840, %v592, 0.0
      %v873 = vadd.f32 %v871, %v872
      %v874 = vsel %vm840, %v594, 0.0
      %v875 = vadd.f32 %v873, %v874
      %v876 = vsel %vm840, %v597, 0.0
      %v877 = vadd.f32 %v875, %v876
      %v878 = vsel %vm840, %v599, 0.0
      %v879 = vadd.f32 %v877, %v878
      %v880 = vsel %vm840, %v602, 0.0
      %v881 = vadd.f32 %v879, %v880
      %v882 = vsel %vm840, %v604, 0.0
      %v883 = vadd.f32 %v881, %v882
      %v884 = vsel %vm840, %v607, 0.0
      %v885 = vadd.f32 %v883, %v884
      %v886 = vsel %vm840, %v609, 0.0
      %v887 = vadd.f32 %v885, %v886
      %v888 = vsel %vm840, %v612, 0.0
      %v889 = vadd.f32 %v887, %v888
      %v890 = vsel %vm840, %v614, 0.0
      %v891 = vadd.f32 %v889, %v890
      %v892 = vsel %vm840, %v617, 0.0
      %v893 = vadd.f32 %v891, %v892
      %v894 = vsel %vm840, %v619, 0.0
      %v895 = vadd.f32 %v893, %v894
      %v896 = vsel %vm840, %v622, 0.0
      %v897 = vadd.f32 %v895, %v896
      %v898 = vsel %vm840, %v624, 0.0
      %v899 = vadd.f32 %v897, %v898
      %v900 = vsel %vm840, %v627, 0.0
      %v901 = vadd.f32 %v899, %v900
      %v902 = vsel %vm840, %v629, 0.0
      %v903 = vadd.f32 %v901, %v902
      %v904 = vsel %vm840, %v632, 0.0
      %v905 = vadd.f32 %v903, %v904
      %v906 = vsel %vm840, %v634, 0.0
      %v907 = vadd.f32 %v905, %v906
      %v908 = vsel %vm840, %v637, 0.0
      %v909 = vadd.f32 %v907, %v908
      %v910 = vsel %vm840, %v639, 0.0
      %v911 = vadd.f32 %v909, %v910
      %v912 = vsel %vm840, %v642, 0.0
      %v913 = vadd.f32 %v911, %v912
      %v914 = vsel %vm840, %v644, 0.0
      %v915 = vadd.f32 %v913, %v914
      %v916 = vsel %vm840, %v647, 0.0
      %v917 = vadd.f32 %v915, %v916
      %v918 = vsel %vm840, %v649, 0.0
      %v919 = vadd.f32 %v917, %v918
      %v920 = vsel %vm840, %v652, 0.0
      %v921 = vadd.f32 %v919, %v920
      %v922 = vsel %vm840, %v654, 0.0
      %v923 = vadd.f32 %v921, %v922
      %v924 = vsel %vm840, %v657, 0.0
      %v925 = vadd.f32 %v923, %v924
      %v926 = vsel %vm840, %v659, 0.0
      %v927 = vadd.f32 %v925, %v926
      %v928 = vsel %vm840, %v662, 0.0
      %v929 = vadd.f32 %v927, %v928
      %v930 = vsel %vm840, %v664, 0.0
      %v931 = vadd.f32 %v929, %v930
      %v932 = vsel %vm840, %v667, 0.0
      %v933 = vadd.f32 %v931, %v932
      %v934 = vsel %vm840, %v669, 0.0
      %v935 = vadd.f32 %v933, %v934
      %v936 = vsel %vm840, %v672, 0.0
      %v937 = vadd.f32 %v935, %v936
      %v938 = vsel %vm840, %v674, 0.0
      %v939 = vadd.f32 %v937, %v938
      %v940 = vsel %vm840, %v677, 0.0
      %v941 = vadd.f32 %v939, %v940
      %v942 = vsel %vm840, %v679, 0.0
      %v943 = vadd.f32 %v941, %v942
      %v944 = vsel %vm840, %v682, 0.0
      %v945 = vadd.f32 %v943, %v944
      %v946 = vsel %vm840, %v684, 0.0
      %v947 = vadd.f32 %v945, %v946
      %v948 = vsel %vm840, %v687, 0.0
      %v949 = vadd.f32 %v947, %v948
      %v950 = vsel %vm840, %v689, 0.0
      %v951 = vadd.f32 %v949, %v950
      %v952 = vsel %vm840, %v692, 0.0
      %v953 = vadd.f32 %v951, %v952
      %v954 = vsel %vm840, %v694, 0.0
      %v955 = vadd.f32 %v953, %v954
      %v956 = vsel %vm840, %v697, 0.0
      %v957 = vadd.f32 %v955, %v956
      %v958 = vsel %vm840, %v699, 0.0
      %v959 = vadd.f32 %v957, %v958
      %v960 = vsel %vm840, %v702, 0.0
      %v961 = vadd.f32 %v959, %v960
      %v962 = vsel %vm840, %v704, 0.0
      %v963 = vadd.f32 %v961, %v962
      %v964 = vsel %vm840, %v707, 0.0
      %v965 = vadd.f32 %v963, %v964
      %v966 = vsel %vm840, %v709, 0.0
      %v967 = vadd.f32 %v965, %v966
      %v968 = vrot.slane %v967, 4
      %v969 = vadd.f32 %v967, %v968
      %v970 = vrot.slane %v969, 2
      %v971 = vadd.f32 %v969, %v970
      %v972 = vrot.slane %v971, 1
      %v973 = vadd.f32 %v971, %v972
      %v974 = vmul.f32 %v552, %v552
      %v975 = vmul.f32 %v554, %v554
      %v976 = vmul.f32 %v557, %v557
      %v977 = vmul.f32 %v559, %v559
      %v978 = vmul.f32 %v562, %v562
      %v979 = vmul.f32 %v564, %v564
      %v980 = vmul.f32 %v567, %v567
      %v981 = vmul.f32 %v569, %v569
      %v982 = vmul.f32 %v572, %v572
      %v983 = vmul.f32 %v574, %v574
      %v984 = vmul.f32 %v577, %v577
      %v985 = vmul.f32 %v579, %v579
      %v986 = vmul.f32 %v582, %v582
      %v987 = vmul.f32 %v584, %v584
      %v988 = vmul.f32 %v587, %v587
      %v989 = vmul.f32 %v589, %v589
      %v990 = vmul.f32 %v592, %v592
      %v991 = vmul.f32 %v594, %v594
      %v992 = vmul.f32 %v597, %v597
      %v993 = vmul.f32 %v599, %v599
      %v994 = vmul.f32 %v602, %v602
      %v995 = vmul.f32 %v604, %v604
      %v996 = vmul.f32 %v607, %v607
      %v997 = vmul.f32 %v609, %v609
      %v998 = vmul.f32 %v612, %v612
      %v999 = vmul.f32 %v614, %v614
      %v1000 = vmul.f32 %v617, %v617
      %v1001 = vmul.f32 %v619, %v619
      %v1002 = vmul.f32 %v622, %v622
      %v1003 = vmul.f32 %v624, %v624
      %v1004 = vmul.f32 %v627, %v627
      %v1005 = vmul.f32 %v629, %v629
      %v1006 = vmul.f32 %v632, %v632
      %v1007 = vmul.f32 %v634, %v634
      %v1008 = vmul.f32 %v637, %v637
      %v1009 = vmul.f32 %v639, %v639
      %v1010 = vmul.f32 %v642, %v642
      %v1011 = vmul.f32 %v644, %v644
      %v1012 = vmul.f32 %v647, %v647
      %v1013 = vmul.f32 %v649, %v649
      %v1014 = vmul.f32 %v652, %v652
      %v1015 = vmul.f32 %v654, %v654
      %v1016 = vmul.f32 %v657, %v657
      %v1017 = vmul.f32 %v659, %v659
      %v1018 = vmul.f32 %v662, %v662
      %v1019 = vmul.f32 %v664, %v664
      %v1020 = vmul.f32 %v667, %v667
      %v1021 = vmul.f32 %v669, %v669
      %v1022 = vmul.f32 %v672, %v672
      %v1023 = vmul.f32 %v674, %v674
      %v1024 = vmul.f32 %v677, %v677
      %v1025 = vmul.f32 %v679, %v679
      %v1026 = vmul.f32 %v682, %v682
      %v1027 = vmul.f32 %v684, %v684
      %v1028 = vmul.f32 %v687, %v687
      %v1029 = vmul.f32 %v689, %v689
      %v1030 = vmul.f32 %v692, %v692
      %v1031 = vmul.f32 %v694, %v694
      %v1032 = vmul.f32 %v697, %v697
      %v1033 = vmul.f32 %v699, %v699
      %v1034 = vmul.f32 %v702, %v702
      %v1035 = vmul.f32 %v704, %v704
      %v1036 = vmul.f32 %v707, %v707
      %v1037 = vmul.f32 %v709, %v709
      %v1038 = vsel %vm840, %v974, 0.0
      %v1039 = vsel %vm840, %v975, 0.0
      %v1040 = vadd.f32 %v1038, %v1039
      %v1041 = vsel %vm840, %v976, 0.0
      %v1042 = vadd.f32 %v1040, %v1041
      %v1043 = vsel %vm840, %v977, 0.0
      %v1044 = vadd.f32 %v1042, %v1043
      %v1045 = vsel %vm840, %v978, 0.0
      %v1046 = vadd.f32 %v1044, %v1045
      %v1047 = vsel %vm840, %v979, 0.0
      %v1048 = vadd.f32 %v1046, %v1047
      %v1049 = vsel %vm840, %v980, 0.0
      %v1050 = vadd.f32 %v1048, %v1049
      %v1051 = vsel %vm840, %v981, 0.0
      %v1052 = vadd.f32 %v1050, %v1051
      %v1053 = vsel %vm840, %v982, 0.0
      %v1054 = vadd.f32 %v1052, %v1053
      %v1055 = vsel %vm840, %v983, 0.0
      %v1056 = vadd.f32 %v1054, %v1055
      %v1057 = vsel %vm840, %v984, 0.0
      %v1058 = vadd.f32 %v1056, %v1057
      %v1059 = vsel %vm840, %v985, 0.0
      %v1060 = vadd.f32 %v1058, %v1059
      %v1061 = vsel %vm840, %v986, 0.0
      %v1062 = vadd.f32 %v1060, %v1061
      %v1063 = vsel %vm840, %v987, 0.0
      %v1064 = vadd.f32 %v1062, %v1063
      %v1065 = vsel %vm840, %v988, 0.0
      %v1066 = vadd.f32 %v1064, %v1065
      %v1067 = vsel %vm840, %v989, 0.0
      %v1068 = vadd.f32 %v1066, %v1067
      %v1069 = vsel %vm840, %v990, 0.0
      %v1070 = vadd.f32 %v1068, %v1069
      %v1071 = vsel %vm840, %v991, 0.0
      %v1072 = vadd.f32 %v1070, %v1071
      %v1073 = vsel %vm840, %v992, 0.0
      %v1074 = vadd.f32 %v1072, %v1073
      %v1075 = vsel %vm840, %v993, 0.0
      %v1076 = vadd.f32 %v1074, %v1075
      %v1077 = vsel %vm840, %v994, 0.0
      %v1078 = vadd.f32 %v1076, %v1077
      %v1079 = vsel %vm840, %v995, 0.0
      %v1080 = vadd.f32 %v1078, %v1079
      %v1081 = vsel %vm840, %v996, 0.0
      %v1082 = vadd.f32 %v1080, %v1081
      %v1083 = vsel %vm840, %v997, 0.0
      %v1084 = vadd.f32 %v1082, %v1083
      %v1085 = vsel %vm840, %v998, 0.0
      %v1086 = vadd.f32 %v1084, %v1085
      %v1087 = vsel %vm840, %v999, 0.0
      %v1088 = vadd.f32 %v1086, %v1087
      %v1089 = vsel %vm840, %v1000, 0.0
      %v1090 = vadd.f32 %v1088, %v1089
      %v1091 = vsel %vm840, %v1001, 0.0
      %v1092 = vadd.f32 %v1090, %v1091
      %v1093 = vsel %vm840, %v1002, 0.0
      %v1094 = vadd.f32 %v1092, %v1093
      %v1095 = vsel %vm840, %v1003, 0.0
      %v1096 = vadd.f32 %v1094, %v1095
      %v1097 = vsel %vm840, %v1004, 0.0
      %v1098 = vadd.f32 %v1096, %v1097
      %v1099 = vsel %vm840, %v1005, 0.0
      %v1100 = vadd.f32 %v1098, %v1099
      %v1101 = vsel %vm840, %v1006, 0.0
      %v1102 = vadd.f32 %v1100, %v1101
      %v1103 = vsel %vm840, %v1007, 0.0
      %v1104 = vadd.f32 %v1102, %v1103
      %v1105 = vsel %vm840, %v1008, 0.0
      %v1106 = vadd.f32 %v1104, %v1105
      %v1107 = vsel %vm840, %v1009, 0.0
      %v1108 = vadd.f32 %v1106, %v1107
      %v1109 = vsel %vm840, %v1010, 0.0
      %v1110 = vadd.f32 %v1108, %v1109
      %v1111 = vsel %vm840, %v1011, 0.0
      %v1112 = vadd.f32 %v1110, %v1111
      %v1113 = vsel %vm840, %v1012, 0.0
      %v1114 = vadd.f32 %v1112, %v1113
      %v1115 = vsel %vm840, %v1013, 0.0
      %v1116 = vadd.f32 %v1114, %v1115
      %v1117 = vsel %vm840, %v1014, 0.0
      %v1118 = vadd.f32 %v1116, %v1117
      %v1119 = vsel %vm840, %v1015, 0.0
      %v1120 = vadd.f32 %v1118, %v1119
      %v1121 = vsel %vm840, %v1016, 0.0
      %v1122 = vadd.f32 %v1120, %v1121
      %v1123 = vsel %vm840, %v1017, 0.0
      %v1124 = vadd.f32 %v1122, %v1123
      %v1125 = vsel %vm840, %v1018, 0.0
      %v1126 = vadd.f32 %v1124, %v1125
      %v1127 = vsel %vm840, %v1019, 0.0
      %v1128 = vadd.f32 %v1126, %v1127
      %v1129 = vsel %vm840, %v1020, 0.0
      %v1130 = vadd.f32 %v1128, %v1129
      %v1131 = vsel %vm840, %v1021, 0.0
      %v1132 = vadd.f32 %v1130, %v1131
      %v1133 = vsel %vm840, %v1022, 0.0
      %v1134 = vadd.f32 %v1132, %v1133
      %v1135 = vsel %vm840, %v1023, 0.0
      %v1136 = vadd.f32 %v1134, %v1135
      %v1137 = vsel %vm840, %v1024, 0.0
      %v1138 = vadd.f32 %v1136, %v1137
      %v1139 = vsel %vm840, %v1025, 0.0
      %v1140 = vadd.f32 %v1138, %v1139
      %v1141 = vsel %vm840, %v1026, 0.0
      %v1142 = vadd.f32 %v1140, %v1141
      %v1143 = vsel %vm840, %v1027, 0.0
      %v1144 = vadd.f32 %v1142, %v1143
      %v1145 = vsel %vm840, %v1028, 0.0
      %v1146 = vadd.f32 %v1144, %v1145
      %v1147 = vsel %vm840, %v1029, 0.0
      %v1148 = vadd.f32 %v1146, %v1147
      %v1149 = vsel %vm840, %v1030, 0.0
      %v1150 = vadd.f32 %v1148, %v1149
      %v1151 = vsel %vm840, %v1031, 0.0
      %v1152 = vadd.f32 %v1150, %v1151
      %v1153 = vsel %vm840, %v1032, 0.0
      %v1154 = vadd.f32 %v1152, %v1153
      %v1155 = vsel %vm840, %v1033, 0.0
      %v1156 = vadd.f32 %v1154, %v1155
      %v1157 = vsel %vm840, %v1034, 0.0
      %v1158 = vadd.f32 %v1156, %v1157
      %v1159 = vsel %vm840, %v1035, 0.0
      %v1160 = vadd.f32 %v1158, %v1159
      %v1161 = vsel %vm840, %v1036, 0.0
      %v1162 = vadd.f32 %v1160, %v1161
      %v1163 = vsel %vm840, %v1037, 0.0
      %v1164 = vadd.f32 %v1162, %v1163
      %v1165 = vrot.slane %v1164, 4
      %v1166 = vadd.f32 %v1164, %v1165
      %v1167 = vrot.slane %v1166, 2
      %v1168 = vadd.f32 %v1166, %v1167
      %v1169 = vrot.slane %v1168, 1
      %v1170 = vadd.f32 %v1168, %v1169
      %1171 = vst.msk [vmem:[%s217] sm:$0xff] %vm840, %v973
      %1172 = vst.msk [vmem:[%s221] sm:$0xff] %vm840, %v1170
      %s1173 = smul.u32 64, %s16
      %p1174 = scmp.lt.s32.totalorder %s1173, 127
      %s1175 = scalar_select %p1174, %s1173, 127
      %s1176 = smul.addr %s1175, 4
      %s1177 = scalar_lea.vmem %s2, %s1176
      %p1178 = scmp.lt.s32.totalorder %s16, 1
      %s1179 = scalar_select %p1178, %s16, 1
      %s1180 = smul.addr %s1179, 8
      %s1181 = scalar_lea.vmem %s3, %s1180
      %p1182 = scmp.lt.s32.totalorder %s16, 1
      %s1183 = scalar_select %p1182, %s16, 1
      %s1184 = smul.addr %s1183, 8
      %s1185 = scalar_lea.vmem %s4, %s1184
      // Predicated region
      $region29: #{conv3d_bn_relu.2} parent=27 // pred_check
        %p1186 = pneg %p81
      $region30: #{conv3d_bn_relu.2} parent=27 // pred_check_branch
        %1188 = sbr.rel (%p1186) target = $region32
      $region31: #{conv3d_bn_relu.2} parent=27 // pred_region
        %s1189 = smul.u32 64, %s16
      $region32: #{conv3d_bn_relu.2} parent=27 // pred_fallthru
        _
      // Predicated region
      $region33: #{conv3d_bn_relu.2} parent=27 // pred_check
        %p1190 = pneg %p107
      $region34: #{conv3d_bn_relu.2} parent=27 // pred_check_branch
        %1192 = sbr.rel (%p1190) target = $region36
      $region35: #{conv3d_bn_relu.2} parent=27 // pred_region
        _
      $region36: #{conv3d_bn_relu.2} parent=27 // pred_fallthru
        _
      // Predicated region
      $region37: #{conv3d_bn_relu.2} parent=27 // pred_check
        %p1193 = pneg %p133
      $region38: #{conv3d_bn_relu.2} parent=27 // pred_check_branch
        %1195 = sbr.rel (%p1193) target = $region40
      $region39: #{conv3d_bn_relu.2} parent=27 // pred_region
        _
      $region40: #{conv3d_bn_relu.2} parent=27 // pred_fallthru
        _
    $region28: #{conv3d_bn_relu.2} parent=5 // pred_fallthru
      _
    %p1196 = scmp.le.s32.totalorder 2, %s11
    // Predicated region
    $region41: #{conv3d_bn_relu.2} parent=5 // pred_check
      %p1197 = pneg %p1196
    $region42: #{conv3d_bn_relu.2} parent=5 // pred_check_branch
      %1199 = sbr.rel (%p1197) target = $region44
    $region43: #{conv3d_bn_relu.2} parent=5 // pred_region
      %s1200 = ssub.s32 %s11, 2
      // Predicated region
      $region45: #{conv3d_bn_relu.2} parent=43 // pred_check
        %p1201 = pneg %p87
      $region46: #{conv3d_bn_relu.2} parent=43 // pred_check_branch
        %1203 = sbr.rel (%p1201) target = $region48
      $region47: #{conv3d_bn_relu.2} parent=43 // pred_region
        %s1204 = smul.u32 64, %s17
        %p1205 = scmp.lt.s32.totalorder %s1204, 127
        %s1206 = scalar_select %p1205, %s1204, 127
        %s1207 = smul.addr %s1206, 4
        %s1208 = scalar_lea.vmem %s2, %s1207
      $region48: #{conv3d_bn_relu.2} parent=43 // pred_fallthru
        _
      // Predicated region
      $region49: #{conv3d_bn_relu.2} parent=43 // pred_check
        %p1209 = pneg %p113
      $region50: #{conv3d_bn_relu.2} parent=43 // pred_check_branch
        %1211 = sbr.rel (%p1209) target = $region52
      $region51: #{conv3d_bn_relu.2} parent=43 // pred_region
        %p1212 = scmp.lt.s32.totalorder %s17, 1
        %s1213 = scalar_select %p1212, %s17, 1
        %s1214 = smul.addr %s1213, 8
        %s1215 = scalar_lea.vmem %s3, %s1214
      $region52: #{conv3d_bn_relu.2} parent=43 // pred_fallthru
        _
      // Predicated region
      $region53: #{conv3d_bn_relu.2} parent=43 // pred_check
        %p1216 = pneg %p139
      $region54: #{conv3d_bn_relu.2} parent=43 // pred_check_branch
        %1218 = sbr.rel (%p1216) target = $region56
      $region55: #{conv3d_bn_relu.2} parent=43 // pred_region
        %p1219 = scmp.lt.s32.totalorder %s17, 1
        %s1220 = scalar_select %p1219, %s17, 1
        %s1221 = smul.addr %s1220, 8
        %s1222 = scalar_lea.vmem %s4, %s1221
      $region56: #{conv3d_bn_relu.2} parent=43 // pred_fallthru
        _
    $region44: #{conv3d_bn_relu.2} parent=5 // pred_fallthru
      _
  $region6: #{conv3d_bn_relu.2} parent=0 // loop_footer
    %s15 = sadd.s32 1, %s11
  $region7: #{conv3d_bn_relu.2} parent=0 // loop_footer_branch
    %10 = sbr.rel target = $region3
  $region8: #{conv3d_bn_relu.2} parent=0 // loop_exit
    _

// kernel: conv3d_bn_relu.3
$region0: #{conv3d_bn_relu.3}
  #allocation0 [shape = 'u32[]', space=smem, size = 0x4, offset = 0x4, fixed_abs, tag = 'smem constant byte address 0x4 - core index']
  #allocation1 [shape = 'u32[72,128]{1,0:T(1,128)}', space=vmem, size = 0x9000, scoped, tag = 'internal scratch']
  %s0 = inlined_call_operand.vmem [shape: bf16[64,128], index: 0, kind: input, shape index: {}]
  %s1 = inlined_call_operand.vmem [shape: f32[1,128], index: 1, kind: input, shape index: {}]
  %s2 = inlined_call_operand.vmem [shape: f32[1,128], index: 2, kind: input, shape index: {}]
  %s3 = inlined_call_operand.vmem [shape: f32[64,128], index: 3, kind: output, shape index: {}]
  %s4 = sld [smem:[#allocation0]]
  $region45: #{conv3d_bn_relu.3} parent=0
    _
  %s6 = ssub.s32 1, %s4
  %s7 = scalar_select 0, %s6, %s4
  loop: start=0, step=1, limit=4
  $region2: #{conv3d_bn_relu.3} parent=0 // loop_pre_header
    _
  $region3: #{conv3d_bn_relu.3} parent=0 // loop_header
    %s9 = sphi 0, %s13
    %p10 = scmp.ge.s32.totalorder %s9, 4
    %s19 = sphi 0, %s21
    %s22 = sphi 0, %s19
    %s23 = sphi 0, %s22
    %s39 = sphi 0, %s23
    %s43 = sphi 0, %s43
    %s45 = sphi 0, %s43
    %s46 = sphi 0, %s45
    %s60 = sphi 0, %s46
    %s64 = sphi 0, %s64
    %s66 = sphi 0, %s64
    %s67 = sphi 0, %s66
    %s81 = sphi 0, %s67
    %s87 = sphi 0, %s89
    %s90 = sphi 0, %s87
    %s91 = sphi 0, %s90
    %s107 = sphi 0, %s91
  $region4: #{conv3d_bn_relu.3} parent=0 // loop_header_branch
    %12 = sbr.rel (%p10) target = $region8
  $region5: #{conv3d_bn_relu.3} parent=0 // loop_body
    %s14 = ssub.s32 %s9, 1
    %s15 = ssub.s32 %s9, 2
    %s16 = sadd.s32 %s9, 1
    %s17 = ssub.s32 %s9, %s16
    %p18 = scmp.eq.s32.totalorder %s17, 0
    %s20 = sadd.s32 %s19, 1
    %s21 = scalar_select %p18, %s19, %s20
    %p24 = pneg %p18
    %p25 = scmp.eq.s32.totalorder %s9, 1
    %p26 = por %p24, %p25
    %p27 = scmp.ne.s32.totalorder %s19, %s22
    %p28 = scmp.eq.s32.totalorder %s9, 0
    %p29 = por %p27, %p28
    %p30 = scmp.ne.s32.totalorder %s19, %s22
    %p31 = scmp.eq.s32.totalorder %s14, 1
    %p32 = por %p30, %p31
    %p33 = scmp.ne.s32.totalorder %s22, %s23
    %p34 = scmp.eq.s32.totalorder %s14, 0
    %p35 = por %p33, %p34
    %p36 = scmp.ne.s32.totalorder %s22, %s23
    %p37 = scmp.eq.s32.totalorder %s15, 1
    %p38 = por %p36, %p37
    %p40 = scmp.ne.s32.totalorder %s23, %s39
    %p41 = scmp.eq.s32.totalorder %s15, 0
    %p42 = por %p40, %p41
    %s44 = sadd.s32 %s43, 1
    %p47 = scmp.eq.s32.totalorder %s9, 1
    %p48 = scmp.ne.s32.totalorder %s43, %s45
    %p49 = scmp.eq.s32.totalorder %s9, 0
    %p50 = por %p48, %p49
    %p51 = scmp.ne.s32.totalorder %s43, %s45
    %p52 = scmp.eq.s32.totalorder %s14, 1
    %p53 = por %p51, %p52
    %p54 = scmp.ne.s32.totalorder %s45, %s46
    %p55 = scmp.eq.s32.totalorder %s14, 0
    %p56 = por %p54, %p55
    %p57 = scmp.ne.s32.totalorder %s45, %s46
    %p58 = scmp.eq.s32.totalorder %s15, 1
    %p59 = por %p57, %p58
    %p61 = scmp.ne.s32.totalorder %s46, %s60
    %p62 = scmp.eq.s32.totalorder %s15, 0
    %p63 = por %p61, %p62
    %s65 = sadd.s32 %s64, 1
    %p68 = scmp.eq.s32.totalorder %s9, 1
    %p69 = scmp.ne.s32.totalorder %s64, %s66
    %p70 = scmp.eq.s32.totalorder %s9, 0
    %p71 = por %p69, %p70
    %p72 = scmp.ne.s32.totalorder %s64, %s66
    %p73 = scmp.eq.s32.totalorder %s14, 1
    %p74 = por %p72, %p73
    %p75 = scmp.ne.s32.totalorder %s66, %s67
    %p76 = scmp.eq.s32.totalorder %s14, 0
    %p77 = por %p75, %p76
    %p78 = scmp.ne.s32.totalorder %s66, %s67
    %p79 = scmp.eq.s32.totalorder %s15, 1
    %p80 = por %p78, %p79
    %p82 = scmp.ne.s32.totalorder %s67, %s81
    %p83 = scmp.eq.s32.totalorder %s15, 0
    %p84 = por %p82, %p83
    %s85 = ssub.s32 %s9, %s16
    %p86 = scmp.eq.s32.totalorder %s85, 0
    %s88 = sadd.s32 %s87, 1
    %s89 = scalar_select %p86, %s87, %s88
    %p92 = pneg %p86
    %p93 = scmp.eq.s32.totalorder %s9, 1
    %p94 = por %p92, %p93
    %p95 = scmp.ne.s32.totalorder %s87, %s90
    %p96 = scmp.eq.s32.totalorder %s9, 0
    %p97 = por %p95, %p96
    %p98 = scmp.ne.s32.totalorder %s87, %s90
    %p99 = scmp.eq.s32.totalorder %s14, 1
    %p100 = por %p98, %p99
    %p101 = scmp.ne.s32.totalorder %s90, %s91
    %p102 = scmp.eq.s32.totalorder %s14, 0
    %p103 = por %p101, %p102
    %p104 = scmp.ne.s32.totalorder %s90, %s91
    %p105 = scmp.eq.s32.totalorder %s15, 1
    %p106 = por %p104, %p105
    %p108 = scmp.ne.s32.totalorder %s91, %s107
    %p109 = scmp.eq.s32.totalorder %s15, 0
    %p110 = por %p108, %p109
    %p111 = scmp.le.s32.totalorder 1, %s9
    %p112 = scmp.lt.s32.totalorder %s9, 3
    %p113 = pnand %p111, %p112
    %p114 = pneg %p113
    // Predicated region
    $region9: #{conv3d_bn_relu.3} parent=5 // pred_check
      _
    $region10: #{conv3d_bn_relu.3} parent=5 // pred_check_branch
      %116 = sbr.rel (%p113) target = $region12
    $region11: #{conv3d_bn_relu.3} parent=5 // pred_region
      %s117 = ssub.s32 %s9, 1
      // Predicated region
      $region13: #{conv3d_bn_relu.3} parent=11 // pred_check
        %p118 = pneg %p56
      $region14: #{conv3d_bn_relu.3} parent=11 // pred_check_branch
        %120 = sbr.rel (%p118) target = $region16
      $region15: #{conv3d_bn_relu.3} parent=11 // pred_region
        _
      $region16: #{conv3d_bn_relu.3} parent=11 // pred_fallthru
        _
      // Predicated region
      $region17: #{conv3d_bn_relu.3} parent=11 // pred_check
        %p121 = pneg %p77
      $region18: #{conv3d_bn_relu.3} parent=11 // pred_check_branch
        %123 = sbr.rel (%p121) target = $region20
      $region19: #{conv3d_bn_relu.3} parent=11 // pred_region
        _
      $region20: #{conv3d_bn_relu.3} parent=11 // pred_fallthru
        _
    $region12: #{conv3d_bn_relu.3} parent=5 // pred_fallthru
      _
    %p124 = scmp.lt.s32.totalorder %s9, 2
    // Predicated region
    $region21: #{conv3d_bn_relu.3} parent=5 // pred_check
      %p125 = pneg %p124
    $region22: #{conv3d_bn_relu.3} parent=5 // pred_check_branch
      %127 = sbr.rel (%p125) target = $region24
    $region23: #{conv3d_bn_relu.3} parent=5 // pred_region
      // Predicated region
      $region25: #{conv3d_bn_relu.3} parent=23 // pred_check
        %p128 = pneg %p29
      $region26: #{conv3d_bn_relu.3} parent=23 // pred_check_branch
        %130 = sbr.rel (%p128) target = $region28
      $region27: #{conv3d_bn_relu.3} parent=23 // pred_region
        %s131 = smul.u32 4, %s9
        %p132 = scmp.lt.s32.totalorder %s131, 7
        %s133 = scalar_select %p132, %s131, 7
        %s134 = smul.addr %s133, 4
        %s135 = scalar_lea.vmem %s0, %s134
        %s136 = smul.u32 4, %s9
      $region28: #{conv3d_bn_relu.3} parent=23 // pred_fallthru
        _
    $region24: #{conv3d_bn_relu.3} parent=5 // pred_fallthru
      _
    %p137 = scmp.le.s32.totalorder 1, %s9
    %p138 = scmp.lt.s32.totalorder %s9, 3
    %p139 = pnand %p137, %p138
    %p140 = pneg %p139
    // Predicated region
    $region29: #{conv3d_bn_relu.3} parent=5 // pred_check
      _
    $region30: #{conv3d_bn_relu.3} parent=5 // pred_check_branch
      %142 = sbr.rel (%p139) target = $region32
    $region31: #{conv3d_bn_relu.3} parent=5 // pred_region
      %s143 = ssub.s32 %s9, 1
      %s144 = smul.u32 4, %s14
      %p145 = scmp.lt.s32.totalorder %s144, 7
      %s146 = scalar_select %p145, %s144, 7
      %s147 = smul.addr %s146, 4
      %s148 = scalar_lea.vmem %s0, %s147
      %p149 = pneg %p35
      %p150 = pneg %p32
      %p151 = pneg %p56
      %p152 = pneg %p53
      %p153 = pneg %p77
      %p154 = pneg %p74
      %p155 = pneg %p103
      %p156 = pneg %p100
      %s157 = smul.u32 4, %s14
      %p158 = scmp.lt.s32.totalorder %s157, 7
      %s159 = scalar_select %p158, %s157, 7
      %s160 = smul.addr %s159, 8
      %s161 = scalar_lea.vmem %s3, %s160
      %s162 = smul.u32 4, %s14
      %p163 = scmp.lt.s32.totalorder %s162, 7
      %s164 = scalar_select %p163, %s162, 7
      %s165 = smul.addr %s164, 4
      %s166 = scalar_lea.vmem %s0, %s165
      %s167 = smul.u32 4, %s14
      %s168 = smul.u32 4, %s14
      %p169 = scmp.lt.s32.totalorder %s168, 7
      %s170 = scalar_select %p169, %s168, 7
      %s171 = smul.addr %s170, 8
      %s172 = scalar_lea.vmem %s3, %s171
      %s173 = smul.u32 4, %s14
      %v174 = vld [vmem:[%s166] sm:$0xf]
      %v175 = vld [vmem:[%s166 + $0x4] sm:$0xf]
      %v176 = vld [vmem:[%s166 + $0x8] sm:$0xf]
      %v177 = vld [vmem:[%s166 + $0xc] sm:$0xf]
      %v178 = vunpack.c.l.bf16 %v174
      %v179 = vunpack.c.l.bf16 %v175
      %v180 = vunpack.c.l.bf16 %v176
      %v181 = vunpack.c.l.bf16 %v177
      %v182 = vld [vmem:[%s1] sm:$0x1]
      %v184 = vperm.slane %v182, 0
      %v186 = vmul.f32 %v178, %v184
      %v187 = vmul.f32 %v179, %v184
      %v188 = vmul.f32 %v180, %v184
      %v189 = vmul.f32 %v181, %v184
      %v190 = vld [vmem:[%s2] sm:$0x1]
      %v192 = vperm.slane %v190, 0
      %v194 = vadd.f32 %v186, %v192
      %v195 = vadd.f32 %v187, %v192
      %v196 = vadd.f32 %v188, %v192
      %v197 = vadd.f32 %v189, %v192
      %v198 = vmax.f32 %v194, 0.0
      %v199 = vmax.f32 %v195, 0.0
      %v200 = vmax.f32 %v196, 0.0
      %v201 = vmax.f32 %v197, 0.0
      %202 = vst [vmem:[%s172] sm:$0xff] %v198
      %203 = vst [vmem:[%s172 + $0x8] sm:$0xff] %v199
      %204 = vst [vmem:[%s172 + $0x10] sm:$0xff] %v200
      %205 = vst [vmem:[%s172 + $0x18] sm:$0xff] %v201
      %s206 = smul.u32 4, %s14
      %p207 = scmp.lt.s32.totalorder %s206, 7
      %s208 = scalar_select %p207, %s206, 7
      %s209 = smul.addr %s208, 8
      %s210 = scalar_lea.vmem %s3, %s209
      // Predicated region
      $region33: #{conv3d_bn_relu.3} parent=31 // pred_check
        %p211 = pneg %p100
      $region34: #{conv3d_bn_relu.3} parent=31 // pred_check_branch
        %213 = sbr.rel (%p211) target = $region36
      $region35: #{conv3d_bn_relu.3} parent=31 // pred_region
        %s214 = smul.u32 4, %s14
      $region36: #{conv3d_bn_relu.3} parent=31 // pred_fallthru
        _
    $region32: #{conv3d_bn_relu.3} parent=5 // pred_fallthru
      _
    %p215 = scmp.le.s32.totalorder 2, %s9
    // Predicated region
    $region37: #{conv3d_bn_relu.3} parent=5 // pred_check
      %p216 = pneg %p215
    $region38: #{conv3d_bn_relu.3} parent=5 // pred_check_branch
      %218 = sbr.rel (%p216) target = $region40
    $region39: #{conv3d_bn_relu.3} parent=5 // pred_region
      %s219 = ssub.s32 %s9, 2
      // Predicated region
      $region41: #{conv3d_bn_relu.3} parent=39 // pred_check
        %p220 = pneg %p106
      $region42: #{conv3d_bn_relu.3} parent=39 // pred_check_branch
        %222 = sbr.rel (%p220) target = $region44
      $region43: #{conv3d_bn_relu.3} parent=39 // pred_region
        %s223 = smul.u32 4, %s15
        %p224 = scmp.lt.s32.totalorder %s223, 7
        %s225 = scalar_select %p224, %s223, 7
        %s226 = smul.addr %s225, 8
        %s227 = scalar_lea.vmem %s3, %s226
      $region44: #{conv3d_bn_relu.3} parent=39 // pred_fallthru
        _
    $region40: #{conv3d_bn_relu.3} parent=5 // pred_fallthru
      _
  $region6: #{conv3d_bn_relu.3} parent=0 // loop_footer
    %s13 = sadd.s32 1, %s9
  $region7: #{conv3d_bn_relu.3} parent=0 // loop_footer_branch
    %8 = sbr.rel target = $region3
  $region8: #{conv3d_bn_relu.3} parent=0 // loop_exit
    _

</llo_original>
